<compile_context>
chip_gen: v7x
topology: tpu7x:2x2x1
jax: 0.10.0
libtpu: 0.0.40
codegen_flags: <defaults>
</compile_context>

<pallas_src>
import functools

import jax
import jax.numpy as jnp
import numpy as np
from jax.experimental import pallas as pl
from jax.experimental.pallas import tpu as pltpu

# ----- shrunk hyper-parameters (512x512 frames -> 32x32 for the small test) -----
IMG = 32                      # stands in for the 512x512 frames in the module
C_IN = 3
C_FEAT = 8                    # stands in for cnn.classifier.in_features
POOL = 4                      # AdaptiveAvgPool2d((4, 4))
IN_FEATURES = C_FEAT * POOL * POOL   # == self.inFeatures (128)
HIDDEN = 32                   # hiddenSize
OUTPUT = 10                   # outputSize
KH = KW = 3
STRIDE = 2
H_OUT = IMG // STRIDE         # conv k=3, s=2, p=1 -> 16x16
N_PIX = H_OUT * H_OUT         # 256 conv output positions per image
K_RAW = C_IN * KH * KW        # 27 real im2col taps
K_AUG = K_RAW + 1             # + ones-row carrying the conv bias
K_PAD = 32                    # zero-padded contraction dim (MXU-friendly sublane count)
TB = 8                        # images processed per grid step in the feature kernel
TBN = TB * N_PIX              # 2048 conv columns per grid step
G3 = 3 * HIDDEN               # 96 real GRU gate lanes (r|z|n)
G3_PAD = 128                  # gi slab padded to a full vreg row -> unmasked stores


# =====================  Pallas kernels  =====================

def _feature_kernel(pt_ref, wc_ref, pool_ref, sel_ref,
                    lng_ref, lnb_ref, wih_ref, bih_ref, gi_ref):
    """Per TB-image block: conv (one im2col matmul, bias folded in) + SiLU +
    4x4 avg-pool + LayerNorm + leaky_relu + hoisted GRU input projection."""
    # conv for all TB images in one MXU push; bias comes from the ones-row of pt.
    y = jnp.dot(wc_ref[...], pt_ref[0], preferred_element_type=jnp.float32)  # (C_FEAT, TBN)
    y = y * jax.nn.sigmoid(y)                                # SiLU on the lane-dense slab

    bigpool = pool_ref[...]     # (N_PIX, IN_FEATURES)  pool matrix tiled per channel
    sel = sel_ref[...]          # (C_FEAT, IN_FEATURES) picks channel c for cols c*16..+15

    rows = []
    for b in range(TB):                                      # unrolled; TB is small
        yb = y[:, b * N_PIX:(b + 1) * N_PIX]                 # static, 128-aligned slice
        # pooled[c, c*16+q] lands in row c of z; select + sublane-sum -> (1,128) row
        z = jnp.dot(yb, bigpool, preferred_element_type=jnp.float32)   # (C_FEAT, 128)
        rows.append(jnp.sum(z * sel, axis=0, keepdims=True))           # channel-major flatten
    feats = jnp.concatenate(rows, axis=0)                    # (TB, IN_FEATURES)

    # LayerNorm(inFeatures, eps=1e-5) + leaky_relu(0.01)
    mu = jnp.mean(feats, axis=-1, keepdims=True)
    xc = feats - mu
    var = jnp.mean(xc * xc, axis=-1, keepdims=True)
    f = xc * jax.lax.rsqrt(var + 1e-5) * lng_ref[...] + lnb_ref[...]
    f = jnp.where(f >= 0, f, 0.01 * f)

    # time-invariant GRU input projection, batched over the image block.
    # W_ih^T / b_ih are zero-padded to 128 lanes so this store is a full-vreg vst.
    gi_ref[...] = (jnp.dot(f, wih_ref[...], preferred_element_type=jnp.float32)
                   + bih_ref[...])                           # (TB, G3_PAD)


def feature_projection(patches_blk, kp):
    nblk = patches_blk.shape[0]
    t_pad = nblk * TB
    return pl.pallas_call(
        _feature_kernel,
        out_shape=jax.ShapeDtypeStruct((t_pad, G3_PAD), jnp.float32),
        grid=(nblk,),
        in_specs=[
            pl.BlockSpec((1, K_PAD, TBN), lambda i: (i, 0, 0)),
            pl.BlockSpec((C_FEAT, K_PAD), lambda i: (0, 0)),
            pl.BlockSpec((N_PIX, IN_FEATURES), lambda i: (0, 0)),
            pl.BlockSpec((C_FEAT, IN_FEATURES), lambda i: (0, 0)),
            pl.BlockSpec((1, IN_FEATURES), lambda i: (0, 0)),
            pl.BlockSpec((1, IN_FEATURES), lambda i: (0, 0)),
            pl.BlockSpec((IN_FEATURES, G3_PAD), lambda i: (0, 0)),
            pl.BlockSpec((1, G3_PAD), lambda i: (0, 0)),
        ],
        out_specs=pl.BlockSpec((TB, G3_PAD), lambda i: (i, 0)),
        compiler_params=pltpu.CompilerParams(dimension_semantics=("parallel",)),
    )(patches_blk, kp["conv_w"], kp["bigpool"], kp["sel"],
      kp["ln_g"], kp["ln_b"], kp["w_ih_t"], kp["b_ih"])


def _gru_fc_kernel(gi_ref, whh_ref, bhh_ref, fcw_ref, fcb_ref, out_ref, *, seq_len):
    """Whole GRU recurrence (only the h-dependent part) + final FC in one launch."""
    whh = whh_ref[...]          # (HIDDEN, G3_PAD)  (columns >= 3H are zero padding)
    bhh = bhh_ref[...]          # (1, G3_PAD)
    hh = HIDDEN

    def step(t, h):
        gi = gi_ref[pl.ds(t, 1), :]                                      # (1, G3_PAD)
        gh = jnp.dot(h, whh, preferred_element_type=jnp.float32) + bhh   # (1, G3_PAD)
        r = jax.nn.sigmoid(gi[:, 0:hh] + gh[:, 0:hh])
        z = jax.nn.sigmoid(gi[:, hh:2 * hh] + gh[:, hh:2 * hh])
        n = jnp.tanh(gi[:, 2 * hh:3 * hh] + r * gh[:, 2 * hh:3 * hh])
        return (1.0 - z) * n + z * h

    h0 = jnp.zeros((1, HIDDEN), jnp.float32)                 # torch default h0 = 0
    h = jax.lax.fori_loop(0, seq_len, step, h0, unroll=seq_len <= 8)
    out_ref[...] = (jnp.dot(h, fcw_ref[...], preferred_element_type=jnp.float32)
                    + fcb_ref[...])


def gru_fc(gi, kp, seq_len):
    t_pad = gi.shape[0]
    return pl.pallas_call(
        functools.partial(_gru_fc_kernel, seq_len=seq_len),
        out_shape=jax.ShapeDtypeStruct((1, OUTPUT), jnp.float32),
        grid=(1,),
        in_specs=[
            pl.BlockSpec((t_pad, G3_PAD), lambda i: (0, 0)),
            pl.BlockSpec((HIDDEN, G3_PAD), lambda i: (0, 0)),
            pl.BlockSpec((1, G3_PAD), lambda i: (0, 0)),
            pl.BlockSpec((HIDDEN, OUTPUT), lambda i: (0, 0)),
            pl.BlockSpec((1, OUTPUT), lambda i: (0, 0)),
        ],
        out_specs=pl.BlockSpec((1, OUTPUT), lambda i: (0, 0)),
        compiler_params=pltpu.CompilerParams(dimension_semantics=("arbitrary",)),
    )(gi, kp["w_hh_t"], kp["b_hh"], kp["fc_w_t"], kp["fc_b"])


# =====================  JAX glue  =====================

def _pad_sequence(seq):
    """Repeat the last frame so the sequence length becomes a multiple of 3."""
    length = seq.shape[1]
    if length % 3 == 2:
        seq = jnp.concatenate([seq, seq[:, -1:]], axis=1)
    elif length % 3 == 1:
        seq = jnp.concatenate([seq, seq[:, -1:], seq[:, -1:]], axis=1)
    return seq


def _im2col_blocks(images, t_pad):
    """(T, C_IN, IMG, IMG) -> (T_pad/TB, K_PAD, TB*N_PIX).

    conv k=3, s=2, p=1; 27 im2col taps + one ones-row (carries the conv bias) on the
    sublane axis, then re-tiled so each grid step gets a single lane-dense
    (K_PAD, TB*N_PIX) patch slab (one conv matmul per block in the kernel)."""
    t = images.shape[0]
    xp = jnp.pad(images, ((0, 0), (0, 0), (1, 1), (1, 1)))
    taps = []
    for c in range(C_IN):
        for ki in range(KH):
            for kj in range(KW):
                taps.append(
                    xp[:, c, ki:ki + STRIDE * H_OUT:STRIDE, kj:kj + STRIDE * H_OUT:STRIDE]
                    .reshape(t, N_PIX))
    taps.append(jnp.ones((t, N_PIX), jnp.float32))           # bias row
    p = jnp.stack(taps, axis=1)                              # (T, K_AUG, N_PIX)
    p = jnp.pad(p, ((0, t_pad - t), (0, K_PAD - K_AUG), (0, 0)))
    nblk = t_pad // TB
    # [blk, k, b*N_PIX + pix]
    return p.reshape(nblk, TB, K_PAD, N_PIX).transpose(0, 2, 1, 3).reshape(nblk, K_PAD, TBN)


@jax.jit
def cnn_lstm_forward(image_sequence, kparams):
    # image_sequence: (1, L, IMG, IMG) -- torch view(length/3, 3, 512, 512) implies batch 1
    seq = _pad_sequence(image_sequence)
    t = seq.shape[1] // 3
    images = seq.reshape(t, C_IN, IMG, IMG).astype(jnp.float32)

    t_pad = pl.cdiv(t, TB) * TB
    patches_blk = _im2col_blocks(images, t_pad)              # (nblk, K_PAD, TB*N_PIX)

    gi = feature_projection(patches_blk, kparams)            # (t_pad, G3_PAD)
    return gru_fc(gi, kparams, seq_len=t)                    # (1, OUTPUT)


# =====================  reference (pure JAX)  =====================

@jax.jit
def reference_forward(image_sequence, params):
    hi = jax.lax.Precision.HIGHEST
    seq = _pad_sequence(image_sequence)
    t = seq.shape[1] // 3
    images = seq.reshape(t, C_IN, IMG, IMG).astype(jnp.float32)

    y = jax.lax.conv_general_dilated(
        images, params["conv_w"], window_strides=(STRIDE, STRIDE),
        padding=((1, 1), (1, 1)), dimension_numbers=("NCHW", "OIHW", "NCHW"),
        precision=hi) + params["conv_b"].reshape(1, C_FEAT, 1, 1)
    y = y * jax.nn.sigmoid(y)                                  # SiLU
    win = H_OUT // POOL
    pooled = y.reshape(t, C_FEAT, POOL, win, POOL, win).mean(axis=(3, 5))
    feats = pooled.reshape(t, IN_FEATURES)                     # torch.flatten of NCHW

    mu = feats.mean(-1, keepdims=True)
    var = ((feats - mu) ** 2).mean(-1, keepdims=True)
    feats = (feats - mu) / jnp.sqrt(var + 1e-5) * params["ln_g"] + params["ln_b"]
    feats = jnp.where(feats >= 0, feats, 0.01 * feats)

    h = jnp.zeros((1, HIDDEN), jnp.float32)
    for i in range(t):
        x = feats[i:i + 1]
        gi = jnp.dot(x, params["w_ih"].T, precision=hi) + params["b_ih"]
        gh = jnp.dot(h, params["w_hh"].T, precision=hi) + params["b_hh"]
        r = jax.nn.sigmoid(gi[:, :HIDDEN] + gh[:, :HIDDEN])
        z = jax.nn.sigmoid(gi[:, HIDDEN:2 * HIDDEN] + gh[:, HIDDEN:2 * HIDDEN])
        n = jnp.tanh(gi[:, 2 * HIDDEN:] + r * gh[:, 2 * HIDDEN:])
        h = (1.0 - z) * n + z * h
    return jnp.dot(h, params["fc_w"].T, precision=hi) + params["fc_b"].reshape(1, OUTPUT)


# =====================  parameters  =====================

def init_params(key):
    ks = jax.random.split(key, 9)
    return {
        # conv stem, PyTorch layout (C_FEAT, C_IN, KH, KW)
        "conv_w": 0.1 * jax.random.normal(ks[0], (C_FEAT, C_IN, KH, KW), jnp.float32),
        "conv_b": 0.1 * jax.random.normal(ks[1], (C_FEAT,), jnp.float32),
        # LayerNorm(inFeatures)
        "ln_g": 1.0 + 0.05 * jax.random.normal(ks[2], (IN_FEATURES,), jnp.float32),
        "ln_b": 0.05 * jax.random.normal(ks[3], (IN_FEATURES,), jnp.float32),
        # GRU (PyTorch gate order [r | z | n])
        "w_ih": 0.1 * jax.random.normal(ks[4], (G3, IN_FEATURES), jnp.float32),
        "w_hh": 0.1 * jax.random.normal(ks[5], (G3, HIDDEN), jnp.float32),
        "b_ih": 0.1 * jax.random.normal(ks[6], (G3,), jnp.float32),
        "b_hh": 0.1 * jax.random.normal(ks[7], (G3,), jnp.float32),
        # fc (bidirectional=False -> Linear(hidden, output))
        "fc_w": 0.1 * jax.random.normal(ks[8], (OUTPUT, HIDDEN), jnp.float32),
        "fc_b": jnp.zeros((OUTPUT,), jnp.float32),
    }


def _bigpool_matrix():
    """Adaptive avg pool 16x16 -> 4x4 as a (256, 128) matrix, tiled once per channel;
    column c*16 + q holds the averaging weights of pooled cell q (identical for every c)."""
    win = H_OUT // POOL
    m = np.zeros((N_PIX, POOL * POOL), np.float32)
    for pi in range(POOL):
        for pj in range(POOL):
            for di in range(win):
                for dj in range(win):
                    m[(pi * win + di) * H_OUT + (pj * win + dj), pi * POOL + pj] = 1.0 / (win * win)
    return jnp.asarray(np.tile(m, (1, C_FEAT)))


def _channel_select_mask():
    """sel[c, c*16+q] = 1: keep channel c's pooled values for feature columns c*16..c*16+15."""
    sel = np.zeros((C_FEAT, IN_FEATURES), np.float32)
    for c in range(C_FEAT):
        sel[c, c * POOL * POOL:(c + 1) * POOL * POOL] = 1.0
    return jnp.asarray(sel)


def prepare_kernel_params(p):
    # conv weights flattened to the im2col tap order, bias folded into tap K_RAW,
    # zero-padded to K_PAD taps.
    conv_w = jnp.zeros((C_FEAT, K_PAD), jnp.float32)
    conv_w = conv_w.at[:, :K_RAW].set(p["conv_w"].reshape(C_FEAT, K_RAW))
    conv_w = conv_w.at[:, K_RAW].set(p["conv_b"])
    return {
        "conv_w": conv_w,                                          # (C_FEAT, K_PAD)
        "bigpool": _bigpool_matrix(),
        "sel": _channel_select_mask(),
        "ln_g": p["ln_g"].reshape(1, IN_FEATURES),
        "ln_b": p["ln_b"].reshape(1, IN_FEATURES),
        # gi / gh weights zero-padded from 3H=96 to 128 lanes for unmasked stores.
        "w_ih_t": jnp.pad(p["w_ih"].T, ((0, 0), (0, G3_PAD - G3))),   # (IN_FEATURES, 128)
        "b_ih": jnp.pad(p["b_ih"].reshape(1, G3), ((0, 0), (0, G3_PAD - G3))),
        "w_hh_t": jnp.pad(p["w_hh"].T, ((0, 0), (0, G3_PAD - G3))),   # (HIDDEN, 128)
        "b_hh": jnp.pad(p["b_hh"].reshape(1, G3), ((0, 0), (0, G3_PAD - G3))),
        "fc_w_t": p["fc_w"].T,                                        # (HIDDEN, OUTPUT)
        "fc_b": p["fc_b"].reshape(1, OUTPUT),
    }


if __name__ == "__main__":
    key = jax.random.PRNGKey(0)
    k_img, k_par = jax.random.split(key)
    params = init_params(k_par)
    kparams = prepare_kernel_params(params)

    # length = 7 (% 3 == 1) exercises the last-frame padding branch -> T = 3 images
    image_sequence = jax.random.normal(k_img, (1, 7, IMG, IMG), jnp.float32)

    out = jax.block_until_ready(cnn_lstm_forward(image_sequence, kparams))
    ref = jax.block_until_ready(reference_forward(image_sequence, params))

    assert out.shape == (1, OUTPUT), out.shape
    if not np.allclose(np.asarray(out), np.asarray(ref), atol=2e-2, rtol=2e-2):
        raise AssertionError(f"mismatch:\n pallas={np.asarray(out)}\n ref={np.asarray(ref)}")
    print("KERNEL_OK")
</pallas_src>

<mosaic_0001>
module attributes {stable_mosaic.version = 11 : i64} {
  func.func @_gru_fc_kernel(%arg0: i32, %arg1: memref<8x128xf32, #tpu.memory_space<vmem>>, %arg2: memref<32x128xf32, #tpu.memory_space<vmem>>, %arg3: memref<1x128xf32, #tpu.memory_space<vmem>>, %arg4: memref<32x10xf32, #tpu.memory_space<vmem>>, %arg5: memref<1x10xf32, #tpu.memory_space<vmem>>, %arg6: memref<1x10xf32, #tpu.memory_space<vmem>>) attributes {dimension_semantics = [#tpu.dimension_semantics<arbitrary>], iteration_bounds = array<i64: 1>, scalar_prefetch = 0 : i64, scratch_operands = 0 : i64, tpu.core_type = #tpu.core_type<tc>, window_params = [{pipeline_mode = #tpu.pipeline_mode<synchronous>, transform_indices = @transform_0, window_bounds = array<i64: 8, 128>}, {pipeline_mode = #tpu.pipeline_mode<synchronous>, transform_indices = @transform_1, window_bounds = array<i64: 32, 128>}, {pipeline_mode = #tpu.pipeline_mode<synchronous>, transform_indices = @transform_2, window_bounds = array<i64: 1, 128>}, {pipeline_mode = #tpu.pipeline_mode<synchronous>, transform_indices = @transform_3, window_bounds = array<i64: 32, 10>}, {pipeline_mode = #tpu.pipeline_mode<synchronous>, transform_indices = @transform_4, window_bounds = array<i64: 1, 10>}, {pipeline_mode = #tpu.pipeline_mode<synchronous>, transform_indices = @transform_5, window_bounds = array<i64: 1, 10>}]} {
    %c0 = arith.constant 0 : index
    %c0_0 = arith.constant 0 : index
    %0 = vector.load %arg2[%c0, %c0_0] : memref<32x128xf32, #tpu.memory_space<vmem>>, vector<32x128xf32>
    %c0_1 = arith.constant 0 : index
    %c0_2 = arith.constant 0 : index
    %1 = vector.load %arg3[%c0_1, %c0_2] : memref<1x128xf32, #tpu.memory_space<vmem>>, vector<1x128xf32>
    %cst = arith.constant 0.000000e+00 : f32
    %2 = vector.broadcast %cst : f32 to vector<1x32xf32>
    %c0_i32 = arith.constant 0 : i32
    %3 = arith.index_cast %c0_i32 : i32 to index
    %c0_3 = arith.constant 0 : index
    %4 = vector.load %arg1[%3, %c0_3] : memref<8x128xf32, #tpu.memory_space<vmem>>, vector<1x128xf32>
    %cst_4 = arith.constant dense<0.000000e+00> : vector<1x128xf32>
    %5 = tpu.matmul %2, %0, %cst_4 {dimension_numbers = #tpu.dot_dimension_numbers<[1], [0], [0], [1], [0, 0, 1, 1], [], []>} : vector<1x32xf32>, vector<32x128xf32>, vector<1x128xf32> -> vector<1x128xf32>
    %6 = arith.addf %5, %1 : vector<1x128xf32>
    %7 = vector.extract_strided_slice %4 {offsets = [0, 0], sizes = [1, 32], strides = [1, 1]} : vector<1x128xf32> to vector<1x32xf32>
    %8 = vector.extract_strided_slice %6 {offsets = [0, 0], sizes = [1, 32], strides = [1, 1]} : vector<1x128xf32> to vector<1x32xf32>
    %9 = arith.addf %7, %8 : vector<1x32xf32>
    %10 = arith.negf %9 : vector<1x32xf32>
    %11 = math.exp %10 : vector<1x32xf32>
    %cst_5 = arith.constant 1.000000e+00 : f32
    %12 = vector.broadcast %cst_5 : f32 to vector<1x32xf32>
    %13 = arith.addf %12, %11 : vector<1x32xf32>
    %14 = arith.divf %12, %13 : vector<1x32xf32>
    %15 = vector.extract_strided_slice %4 {offsets = [0, 32], sizes = [1, 32], strides = [1, 1]} : vector<1x128xf32> to vector<1x32xf32>
    %16 = vector.extract_strided_slice %6 {offsets = [0, 32], sizes = [1, 32], strides = [1, 1]} : vector<1x128xf32> to vector<1x32xf32>
    %17 = arith.addf %15, %16 : vector<1x32xf32>
    %18 = arith.negf %17 : vector<1x32xf32>
    %19 = math.exp %18 : vector<1x32xf32>
    %cst_6 = arith.constant 1.000000e+00 : f32
    %20 = vector.broadcast %cst_6 : f32 to vector<1x32xf32>
    %21 = arith.addf %20, %19 : vector<1x32xf32>
    %22 = arith.divf %20, %21 : vector<1x32xf32>
    %23 = vector.extract_strided_slice %4 {offsets = [0, 64], sizes = [1, 32], strides = [1, 1]} : vector<1x128xf32> to vector<1x32xf32>
    %24 = vector.extract_strided_slice %6 {offsets = [0, 64], sizes = [1, 32], strides = [1, 1]} : vector<1x128xf32> to vector<1x32xf32>
    %25 = arith.mulf %14, %24 : vector<1x32xf32>
    %26 = arith.addf %23, %25 : vector<1x32xf32>
    %27 = math.tanh %26 : vector<1x32xf32>
    %cst_7 = arith.constant 1.000000e+00 : f32
    %28 = vector.broadcast %cst_7 : f32 to vector<1x32xf32>
    %29 = arith.subf %28, %22 : vector<1x32xf32>
    %30 = arith.mulf %29, %27 : vector<1x32xf32>
    %31 = arith.mulf %22, %2 : vector<1x32xf32>
    %32 = arith.addf %30, %31 : vector<1x32xf32>
    %c1_i32 = arith.constant 1 : i32
    %33 = arith.index_cast %c1_i32 : i32 to index
    %c0_8 = arith.constant 0 : index
    %34 = vector.load %arg1[%33, %c0_8] : memref<8x128xf32, #tpu.memory_space<vmem>>, vector<1x128xf32>
    %cst_9 = arith.constant dense<0.000000e+00> : vector<1x128xf32>
    %35 = tpu.matmul %32, %0, %cst_9 {dimension_numbers = #tpu.dot_dimension_numbers<[1], [0], [0], [1], [0, 0, 1, 1], [], []>} : vector<1x32xf32>, vector<32x128xf32>, vector<1x128xf32> -> vector<1x128xf32>
    %36 = arith.addf %35, %1 : vector<1x128xf32>
    %37 = vector.extract_strided_slice %34 {offsets = [0, 0], sizes = [1, 32], strides = [1, 1]} : vector<1x128xf32> to vector<1x32xf32>
    %38 = vector.extract_strided_slice %36 {offsets = [0, 0], sizes = [1, 32], strides = [1, 1]} : vector<1x128xf32> to vector<1x32xf32>
    %39 = arith.addf %37, %38 : vector<1x32xf32>
    %40 = arith.negf %39 : vector<1x32xf32>
    %41 = math.exp %40 : vector<1x32xf32>
    %cst_10 = arith.constant 1.000000e+00 : f32
    %42 = vector.broadcast %cst_10 : f32 to vector<1x32xf32>
    %43 = arith.addf %42, %41 : vector<1x32xf32>
    %44 = arith.divf %42, %43 : vector<1x32xf32>
    %45 = vector.extract_strided_slice %34 {offsets = [0, 32], sizes = [1, 32], strides = [1, 1]} : vector<1x128xf32> to vector<1x32xf32>
    %46 = vector.extract_strided_slice %36 {offsets = [0, 32], sizes = [1, 32], strides = [1, 1]} : vector<1x128xf32> to vector<1x32xf32>
    %47 = arith.addf %45, %46 : vector<1x32xf32>
    %48 = arith.negf %47 : vector<1x32xf32>
    %49 = math.exp %48 : vector<1x32xf32>
    %cst_11 = arith.constant 1.000000e+00 : f32
    %50 = vector.broadcast %cst_11 : f32 to vector<1x32xf32>
    %51 = arith.addf %50, %49 : vector<1x32xf32>
    %52 = arith.divf %50, %51 : vector<1x32xf32>
    %53 = vector.extract_strided_slice %34 {offsets = [0, 64], sizes = [1, 32], strides = [1, 1]} : vector<1x128xf32> to vector<1x32xf32>
    %54 = vector.extract_strided_slice %36 {offsets = [0, 64], sizes = [1, 32], strides = [1, 1]} : vector<1x128xf32> to vector<1x32xf32>
    %55 = arith.mulf %44, %54 : vector<1x32xf32>
    %56 = arith.addf %53, %55 : vector<1x32xf32>
    %57 = math.tanh %56 : vector<1x32xf32>
    %cst_12 = arith.constant 1.000000e+00 : f32
    %58 = vector.broadcast %cst_12 : f32 to vector<1x32xf32>
    %59 = arith.subf %58, %52 : vector<1x32xf32>
    %60 = arith.mulf %59, %57 : vector<1x32xf32>
    %61 = arith.mulf %52, %32 : vector<1x32xf32>
    %62 = arith.addf %60, %61 : vector<1x32xf32>
    %c2_i32 = arith.constant 2 : i32
    %63 = arith.index_cast %c2_i32 : i32 to index
    %c0_13 = arith.constant 0 : index
    %64 = vector.load %arg1[%63, %c0_13] : memref<8x128xf32, #tpu.memory_space<vmem>>, vector<1x128xf32>
    %cst_14 = arith.constant dense<0.000000e+00> : vector<1x128xf32>
    %65 = tpu.matmul %62, %0, %cst_14 {dimension_numbers = #tpu.dot_dimension_numbers<[1], [0], [0], [1], [0, 0, 1, 1], [], []>} : vector<1x32xf32>, vector<32x128xf32>, vector<1x128xf32> -> vector<1x128xf32>
    %66 = arith.addf %65, %1 : vector<1x128xf32>
    %67 = vector.extract_strided_slice %64 {offsets = [0, 0], sizes = [1, 32], strides = [1, 1]} : vector<1x128xf32> to vector<1x32xf32>
    %68 = vector.extract_strided_slice %66 {offsets = [0, 0], sizes = [1, 32], strides = [1, 1]} : vector<1x128xf32> to vector<1x32xf32>
    %69 = arith.addf %67, %68 : vector<1x32xf32>
    %70 = arith.negf %69 : vector<1x32xf32>
    %71 = math.exp %70 : vector<1x32xf32>
    %cst_15 = arith.constant 1.000000e+00 : f32
    %72 = vector.broadcast %cst_15 : f32 to vector<1x32xf32>
    %73 = arith.addf %72, %71 : vector<1x32xf32>
    %74 = arith.divf %72, %73 : vector<1x32xf32>
    %75 = vector.extract_strided_slice %64 {offsets = [0, 32], sizes = [1, 32], strides = [1, 1]} : vector<1x128xf32> to vector<1x32xf32>
    %76 = vector.extract_strided_slice %66 {offsets = [0, 32], sizes = [1, 32], strides = [1, 1]} : vector<1x128xf32> to vector<1x32xf32>
    %77 = arith.addf %75, %76 : vector<1x32xf32>
    %78 = arith.negf %77 : vector<1x32xf32>
    %79 = math.exp %78 : vector<1x32xf32>
    %cst_16 = arith.constant 1.000000e+00 : f32
    %80 = vector.broadcast %cst_16 : f32 to vector<1x32xf32>
    %81 = arith.addf %80, %79 : vector<1x32xf32>
    %82 = arith.divf %80, %81 : vector<1x32xf32>
    %83 = vector.extract_strided_slice %64 {offsets = [0, 64], sizes = [1, 32], strides = [1, 1]} : vector<1x128xf32> to vector<1x32xf32>
    %84 = vector.extract_strided_slice %66 {offsets = [0, 64], sizes = [1, 32], strides = [1, 1]} : vector<1x128xf32> to vector<1x32xf32>
    %85 = arith.mulf %74, %84 : vector<1x32xf32>
    %86 = arith.addf %83, %85 : vector<1x32xf32>
    %87 = math.tanh %86 : vector<1x32xf32>
    %cst_17 = arith.constant 1.000000e+00 : f32
    %88 = vector.broadcast %cst_17 : f32 to vector<1x32xf32>
    %89 = arith.subf %88, %82 : vector<1x32xf32>
    %90 = arith.mulf %89, %87 : vector<1x32xf32>
    %91 = arith.mulf %82, %62 : vector<1x32xf32>
    %92 = arith.addf %90, %91 : vector<1x32xf32>
    %c3_i32 = arith.constant 3 : i32
    %c0_18 = arith.constant 0 : index
    %c0_19 = arith.constant 0 : index
    %93 = vector.load %arg4[%c0_18, %c0_19] : memref<32x10xf32, #tpu.memory_space<vmem>>, vector<32x10xf32>
    %cst_20 = arith.constant dense<0.000000e+00> : vector<1x10xf32>
    %94 = tpu.matmul %92, %93, %cst_20 {dimension_numbers = #tpu.dot_dimension_numbers<[1], [0], [0], [1], [0, 0, 1, 1], [], []>} : vector<1x32xf32>, vector<32x10xf32>, vector<1x10xf32> -> vector<1x10xf32>
    %c0_21 = arith.constant 0 : index
    %c0_22 = arith.constant 0 : index
    %95 = vector.load %arg5[%c0_21, %c0_22] : memref<1x10xf32, #tpu.memory_space<vmem>>, vector<1x10xf32>
    %96 = arith.addf %94, %95 : vector<1x10xf32>
    %c0_23 = arith.constant 0 : index
    %c0_24 = arith.constant 0 : index
    %97 = vector.load %arg6[%c0_23, %c0_24] : memref<1x10xf32, #tpu.memory_space<vmem>>, vector<1x10xf32>
    tpu.vector_store %arg6[%c0_23, %c0_24], %96 {strides = array<i32>} : memref<1x10xf32, #tpu.memory_space<vmem>>, vector<1x10xf32>,
    return
  }
  func.func @transform_0(%arg0: i32) -> (i32, i32) {
    %c0_i32 = arith.constant 0 : i32
    %c0_i32_0 = arith.constant 0 : i32
    %c0_i32_1 = arith.constant 0 : i32
    return %c0_i32, %c0_i32_0 : i32, i32
  }
  func.func @transform_1(%arg0: i32) -> (i32, i32) {
    %c0_i32 = arith.constant 0 : i32
    %c0_i32_0 = arith.constant 0 : i32
    %c0_i32_1 = arith.constant 0 : i32
    return %c0_i32, %c0_i32_0 : i32, i32
  }
  func.func @transform_2(%arg0: i32) -> (i32, i32) {
    %c0_i32 = arith.constant 0 : i32
    %c0_i32_0 = arith.constant 0 : i32
    %c0_i32_1 = arith.constant 0 : i32
    return %c0_i32, %c0_i32_0 : i32, i32
  }
  func.func @transform_3(%arg0: i32) -> (i32, i32) {
    %c0_i32 = arith.constant 0 : i32
    %c0_i32_0 = arith.constant 0 : i32
    %c0_i32_1 = arith.constant 0 : i32
    return %c0_i32, %c0_i32_0 : i32, i32
  }
  func.func @transform_4(%arg0: i32) -> (i32, i32) {
    %c0_i32 = arith.constant 0 : i32
    %c0_i32_0 = arith.constant 0 : i32
    %c0_i32_1 = arith.constant 0 : i32
    return %c0_i32, %c0_i32_0 : i32, i32
  }
  func.func @transform_5(%arg0: i32) -> (i32, i32) {
    %c0_i32 = arith.constant 0 : i32
    %c0_i32_0 = arith.constant 0 : i32
    %c0_i32_1 = arith.constant 0 : i32
    return %c0_i32, %c0_i32_0 : i32, i32
  }
}

module attributes {stable_mosaic.version = 11 : i64} {
  func.func @_feature_kernel(%arg0: i32, %arg1: memref<1x32x2048xf32, #tpu.memory_space<vmem>>, %arg2: memref<8x32xf32, #tpu.memory_space<vmem>>, %arg3: memref<256x128xf32, #tpu.memory_space<vmem>>, %arg4: memref<8x128xf32, #tpu.memory_space<vmem>>, %arg5: memref<1x128xf32, #tpu.memory_space<vmem>>, %arg6: memref<1x128xf32, #tpu.memory_space<vmem>>, %arg7: memref<128x128xf32, #tpu.memory_space<vmem>>, %arg8: memref<1x128xf32, #tpu.memory_space<vmem>>, %arg9: memref<8x128xf32, #tpu.memory_space<vmem>>) attributes {dimension_semantics = [#tpu.dimension_semantics<parallel>], iteration_bounds = array<i64: 1>, scalar_prefetch = 0 : i64, scratch_operands = 0 : i64, tpu.core_type = #tpu.core_type<tc>, window_params = [{transform_indices = @transform_0, window_bounds = array<i64: 1, 32, 2048>}, {pipeline_mode = #tpu.pipeline_mode<synchronous>, transform_indices = @transform_1, window_bounds = array<i64: 8, 32>}, {pipeline_mode = #tpu.pipeline_mode<synchronous>, transform_indices = @transform_2, window_bounds = array<i64: 256, 128>}, {pipeline_mode = #tpu.pipeline_mode<synchronous>, transform_indices = @transform_3, window_bounds = array<i64: 8, 128>}, {pipeline_mode = #tpu.pipeline_mode<synchronous>, transform_indices = @transform_4, window_bounds = array<i64: 1, 128>}, {pipeline_mode = #tpu.pipeline_mode<synchronous>, transform_indices = @transform_5, window_bounds = array<i64: 1, 128>}, {pipeline_mode = #tpu.pipeline_mode<synchronous>, transform_indices = @transform_6, window_bounds = array<i64: 128, 128>}, {pipeline_mode = #tpu.pipeline_mode<synchronous>, transform_indices = @transform_7, window_bounds = array<i64: 1, 128>}, {transform_indices = @transform_8, window_bounds = array<i64: 8, 128>}]} {
    %c0 = arith.constant 0 : index
    %c0_0 = arith.constant 0 : index
    %0 = vector.load %arg2[%c0, %c0_0] : memref<8x32xf32, #tpu.memory_space<vmem>>, vector<8x32xf32>
    %c0_1 = arith.constant 0 : index
    %c0_2 = arith.constant 0 : index
    %c0_3 = arith.constant 0 : index
    %1 = vector.load %arg1[%c0_1, %c0_2, %c0_3] : memref<1x32x2048xf32, #tpu.memory_space<vmem>>, vector<1x32x2048xf32>
    %2 = vector.shape_cast %1 : vector<1x32x2048xf32> to vector<32x2048xf32>
    %cst = arith.constant dense<0.000000e+00> : vector<8x2048xf32>
    %3 = tpu.matmul %0, %2, %cst {dimension_numbers = #tpu.dot_dimension_numbers<[1], [0], [0], [1], [0, 0, 1, 1], [], []>} : vector<8x32xf32>, vector<32x2048xf32>, vector<8x2048xf32> -> vector<8x2048xf32>
    %4 = arith.negf %3 : vector<8x2048xf32>
    %5 = math.exp %4 : vector<8x2048xf32>
    %cst_4 = arith.constant 1.000000e+00 : f32
    %6 = vector.broadcast %cst_4 : f32 to vector<8x2048xf32>
    %7 = arith.addf %6, %5 : vector<8x2048xf32>
    %8 = arith.divf %6, %7 : vector<8x2048xf32>
    %9 = arith.mulf %3, %8 : vector<8x2048xf32>
    %c0_5 = arith.constant 0 : index
    %c0_6 = arith.constant 0 : index
    %10 = vector.load %arg3[%c0_5, %c0_6] : memref<256x128xf32, #tpu.memory_space<vmem>>, vector<256x128xf32>
    %c0_7 = arith.constant 0 : index
    %c0_8 = arith.constant 0 : index
    %11 = vector.load %arg4[%c0_7, %c0_8] : memref<8x128xf32, #tpu.memory_space<vmem>>, vector<8x128xf32>
    %12 = vector.extract_strided_slice %9 {offsets = [0, 0], sizes = [8, 256], strides = [1, 1]} : vector<8x2048xf32> to vector<8x256xf32>
    %cst_9 = arith.constant dense<0.000000e+00> : vector<8x128xf32>
    %13 = tpu.matmul %12, %10, %cst_9 {dimension_numbers = #tpu.dot_dimension_numbers<[1], [0], [0], [1], [0, 0, 1, 1], [], []>} : vector<8x256xf32>, vector<256x128xf32>, vector<8x128xf32> -> vector<8x128xf32>
    %14 = arith.mulf %13, %11 : vector<8x128xf32>
    %cst_10 = arith.constant dense<0.000000e+00> : vector<128xf32>
    %15 = vector.multi_reduction <add>, %14, %cst_10 [0] : vector<8x128xf32> to vector<128xf32>
    %16 = vector.shape_cast %15 : vector<128xf32> to vector<1x128xf32>
    %17 = vector.extract_strided_slice %9 {offsets = [0, 256], sizes = [8, 256], strides = [1, 1]} : vector<8x2048xf32> to vector<8x256xf32>
    %cst_11 = arith.constant dense<0.000000e+00> : vector<8x128xf32>
    %18 = tpu.matmul %17, %10, %cst_11 {dimension_numbers = #tpu.dot_dimension_numbers<[1], [0], [0], [1], [0, 0, 1, 1], [], []>} : vector<8x256xf32>, vector<256x128xf32>, vector<8x128xf32> -> vector<8x128xf32>
    %19 = arith.mulf %18, %11 : vector<8x128xf32>
    %cst_12 = arith.constant dense<0.000000e+00> : vector<128xf32>
    %20 = vector.multi_reduction <add>, %19, %cst_12 [0] : vector<8x128xf32> to vector<128xf32>
    %21 = vector.shape_cast %20 : vector<128xf32> to vector<1x128xf32>
    %22 = vector.extract_strided_slice %9 {offsets = [0, 512], sizes = [8, 256], strides = [1, 1]} : vector<8x2048xf32> to vector<8x256xf32>
    %cst_13 = arith.constant dense<0.000000e+00> : vector<8x128xf32>
    %23 = tpu.matmul %22, %10, %cst_13 {dimension_numbers = #tpu.dot_dimension_numbers<[1], [0], [0], [1], [0, 0, 1, 1], [], []>} : vector<8x256xf32>, vector<256x128xf32>, vector<8x128xf32> -> vector<8x128xf32>
    %24 = arith.mulf %23, %11 : vector<8x128xf32>
    %cst_14 = arith.constant dense<0.000000e+00> : vector<128xf32>
    %25 = vector.multi_reduction <add>, %24, %cst_14 [0] : vector<8x128xf32> to vector<128xf32>
    %26 = vector.shape_cast %25 : vector<128xf32> to vector<1x128xf32>
    %27 = vector.extract_strided_slice %9 {offsets = [0, 768], sizes = [8, 256], strides = [1, 1]} : vector<8x2048xf32> to vector<8x256xf32>
    %cst_15 = arith.constant dense<0.000000e+00> : vector<8x128xf32>
    %28 = tpu.matmul %27, %10, %cst_15 {dimension_numbers = #tpu.dot_dimension_numbers<[1], [0], [0], [1], [0, 0, 1, 1], [], []>} : vector<8x256xf32>, vector<256x128xf32>, vector<8x128xf32> -> vector<8x128xf32>
    %29 = arith.mulf %28, %11 : vector<8x128xf32>
    %cst_16 = arith.constant dense<0.000000e+00> : vector<128xf32>
    %30 = vector.multi_reduction <add>, %29, %cst_16 [0] : vector<8x128xf32> to vector<128xf32>
    %31 = vector.shape_cast %30 : vector<128xf32> to vector<1x128xf32>
    %32 = vector.extract_strided_slice %9 {offsets = [0, 1024], sizes = [8, 256], strides = [1, 1]} : vector<8x2048xf32> to vector<8x256xf32>
    %cst_17 = arith.constant dense<0.000000e+00> : vector<8x128xf32>
    %33 = tpu.matmul %32, %10, %cst_17 {dimension_numbers = #tpu.dot_dimension_numbers<[1], [0], [0], [1], [0, 0, 1, 1], [], []>} : vector<8x256xf32>, vector<256x128xf32>, vector<8x128xf32> -> vector<8x128xf32>
    %34 = arith.mulf %33, %11 : vector<8x128xf32>
    %cst_18 = arith.constant dense<0.000000e+00> : vector<128xf32>
    %35 = vector.multi_reduction <add>, %34, %cst_18 [0] : vector<8x128xf32> to vector<128xf32>
    %36 = vector.shape_cast %35 : vector<128xf32> to vector<1x128xf32>
    %37 = vector.extract_strided_slice %9 {offsets = [0, 1280], sizes = [8, 256], strides = [1, 1]} : vector<8x2048xf32> to vector<8x256xf32>
    %cst_19 = arith.constant dense<0.000000e+00> : vector<8x128xf32>
    %38 = tpu.matmul %37, %10, %cst_19 {dimension_numbers = #tpu.dot_dimension_numbers<[1], [0], [0], [1], [0, 0, 1, 1], [], []>} : vector<8x256xf32>, vector<256x128xf32>, vector<8x128xf32> -> vector<8x128xf32>
    %39 = arith.mulf %38, %11 : vector<8x128xf32>
    %cst_20 = arith.constant dense<0.000000e+00> : vector<128xf32>
    %40 = vector.multi_reduction <add>, %39, %cst_20 [0] : vector<8x128xf32> to vector<128xf32>
    %41 = vector.shape_cast %40 : vector<128xf32> to vector<1x128xf32>
    %42 = vector.extract_strided_slice %9 {offsets = [0, 1536], sizes = [8, 256], strides = [1, 1]} : vector<8x2048xf32> to vector<8x256xf32>
    %cst_21 = arith.constant dense<0.000000e+00> : vector<8x128xf32>
    %43 = tpu.matmul %42, %10, %cst_21 {dimension_numbers = #tpu.dot_dimension_numbers<[1], [0], [0], [1], [0, 0, 1, 1], [], []>} : vector<8x256xf32>, vector<256x128xf32>, vector<8x128xf32> -> vector<8x128xf32>
    %44 = arith.mulf %43, %11 : vector<8x128xf32>
    %cst_22 = arith.constant dense<0.000000e+00> : vector<128xf32>
    %45 = vector.multi_reduction <add>, %44, %cst_22 [0] : vector<8x128xf32> to vector<128xf32>
    %46 = vector.shape_cast %45 : vector<128xf32> to vector<1x128xf32>
    %47 = vector.extract_strided_slice %9 {offsets = [0, 1792], sizes = [8, 256], strides = [1, 1]} : vector<8x2048xf32> to vector<8x256xf32>
    %cst_23 = arith.constant dense<0.000000e+00> : vector<8x128xf32>
    %48 = tpu.matmul %47, %10, %cst_23 {dimension_numbers = #tpu.dot_dimension_numbers<[1], [0], [0], [1], [0, 0, 1, 1], [], []>} : vector<8x256xf32>, vector<256x128xf32>, vector<8x128xf32> -> vector<8x128xf32>
    %49 = arith.mulf %48, %11 : vector<8x128xf32>
    %cst_24 = arith.constant dense<0.000000e+00> : vector<128xf32>
    %50 = vector.multi_reduction <add>, %49, %cst_24 [0] : vector<8x128xf32> to vector<128xf32>
    %51 = vector.shape_cast %50 : vector<128xf32> to vector<1x128xf32>
    %52 = tpu.concatenate %16, %21, %26, %31, %36, %41, %46, %51 in 0 : vector<1x128xf32>, vector<1x128xf32>, vector<1x128xf32>, vector<1x128xf32>, vector<1x128xf32>, vector<1x128xf32>, vector<1x128xf32>, vector<1x128xf32> -> vector<8x128xf32>
    %cst_25 = arith.constant dense<0.000000e+00> : vector<8xf32>
    %53 = vector.multi_reduction <add>, %52, %cst_25 [1] : vector<8x128xf32> to vector<8xf32>
    %54 = vector.shape_cast %53 : vector<8xf32> to vector<8x1xf32>
    %cst_26 = arith.constant 1.280000e+02 : f32
    %55 = vector.broadcast %cst_26 : f32 to vector<8x1xf32>
    %56 = arith.divf %54, %55 : vector<8x1xf32>
    %57 = vector.broadcast %56 : vector<8x1xf32> to vector<8x128xf32>
    %58 = arith.subf %52, %57 : vector<8x128xf32>
    %59 = arith.mulf %58, %58 : vector<8x128xf32>
    %cst_27 = arith.constant dense<0.000000e+00> : vector<8xf32>
    %60 = vector.multi_reduction <add>, %59, %cst_27 [1] : vector<8x128xf32> to vector<8xf32>
    %61 = vector.shape_cast %60 : vector<8xf32> to vector<8x1xf32>
    %cst_28 = arith.constant 1.280000e+02 : f32
    %62 = vector.broadcast %cst_28 : f32 to vector<8x1xf32>
    %63 = arith.divf %61, %62 : vector<8x1xf32>
    %cst_29 = arith.constant 9.99999974E-6 : f32
    %64 = vector.broadcast %cst_29 : f32 to vector<8x1xf32>
    %65 = arith.addf %63, %64 : vector<8x1xf32>
    %66 = math.rsqrt %65 : vector<8x1xf32>
    %67 = vector.broadcast %66 : vector<8x1xf32> to vector<8x128xf32>
    %68 = arith.mulf %58, %67 : vector<8x128xf32>
    %c0_30 = arith.constant 0 : index
    %c0_31 = arith.constant 0 : index
    %69 = vector.load %arg5[%c0_30, %c0_31] : memref<1x128xf32, #tpu.memory_space<vmem>>, vector<1x128xf32>
    %70 = vector.broadcast %69 : vector<1x128xf32> to vector<8x128xf32>
    %71 = arith.mulf %68, %70 : vector<8x128xf32>
    %c0_32 = arith.constant 0 : index
    %c0_33 = arith.constant 0 : index
    %72 = vector.load %arg6[%c0_32, %c0_33] : memref<1x128xf32, #tpu.memory_space<vmem>>, vector<1x128xf32>
    %73 = vector.broadcast %72 : vector<1x128xf32> to vector<8x128xf32>
    %74 = arith.addf %71, %73 : vector<8x128xf32>
    %cst_34 = arith.constant 0.000000e+00 : f32
    %75 = vector.broadcast %cst_34 : f32 to vector<8x128xf32>
    %76 = arith.cmpf oge, %74, %75 : vector<8x128xf32>
    %cst_35 = arith.constant 0.00999999977 : f32
    %77 = vector.broadcast %cst_35 : f32 to vector<8x128xf32>
    %78 = arith.mulf %77, %74 : vector<8x128xf32>
    %79 = arith.select %76, %74, %78 : vector<8x128xi1>, vector<8x128xf32>
    %c0_36 = arith.constant 0 : index
    %c0_37 = arith.constant 0 : index
    %80 = vector.load %arg7[%c0_36, %c0_37] : memref<128x128xf32, #tpu.memory_space<vmem>>, vector<128x128xf32>
    %cst_38 = arith.constant dense<0.000000e+00> : vector<8x128xf32>
    %81 = tpu.matmul %79, %80, %cst_38 {dimension_numbers = #tpu.dot_dimension_numbers<[1], [0], [0], [1], [0, 0, 1, 1], [], []>} : vector<8x128xf32>, vector<128x128xf32>, vector<8x128xf32> -> vector<8x128xf32>
    %c0_39 = arith.constant 0 : index
    %c0_40 = arith.constant 0 : index
    %82 = vector.load %arg8[%c0_39, %c0_40] : memref<1x128xf32, #tpu.memory_space<vmem>>, vector<1x128xf32>
    %83 = vector.broadcast %82 : vector<1x128xf32> to vector<8x128xf32>
    %84 = arith.addf %81, %83 : vector<8x128xf32>
    %c0_41 = arith.constant 0 : index
    %c0_42 = arith.constant 0 : index
    %85 = vector.load %arg9[%c0_41, %c0_42] : memref<8x128xf32, #tpu.memory_space<vmem>>, vector<8x128xf32>
    tpu.vector_store %arg9[%c0_41, %c0_42], %84 {strides = array<i32>} : memref<8x128xf32, #tpu.memory_space<vmem>>, vector<8x128xf32>,
    return
  }
  func.func @transform_0(%arg0: i32) -> (i32, i32, i32) {
    %c0_i32 = arith.constant 0 : i32
    %c0_i32_0 = arith.constant 0 : i32
    %c0_i32_1 = arith.constant 0 : i32
    return %arg0, %c0_i32, %c0_i32_0 : i32, i32, i32
  }
  func.func @transform_1(%arg0: i32) -> (i32, i32) {
    %c0_i32 = arith.constant 0 : i32
    %c0_i32_0 = arith.constant 0 : i32
    %c0_i32_1 = arith.constant 0 : i32
    return %c0_i32, %c0_i32_0 : i32, i32
  }
  func.func @transform_2(%arg0: i32) -> (i32, i32) {
    %c0_i32 = arith.constant 0 : i32
    %c0_i32_0 = arith.constant 0 : i32
    %c0_i32_1 = arith.constant 0 : i32
    return %c0_i32, %c0_i32_0 : i32, i32
  }
  func.func @transform_3(%arg0: i32) -> (i32, i32) {
    %c0_i32 = arith.constant 0 : i32
    %c0_i32_0 = arith.constant 0 : i32
    %c0_i32_1 = arith.constant 0 : i32
    return %c0_i32, %c0_i32_0 : i32, i32
  }
  func.func @transform_4(%arg0: i32) -> (i32, i32) {
    %c0_i32 = arith.constant 0 : i32
    %c0_i32_0 = arith.constant 0 : i32
    %c0_i32_1 = arith.constant 0 : i32
    return %c0_i32, %c0_i32_0 : i32, i32
  }
  func.func @transform_5(%arg0: i32) -> (i32, i32) {
    %c0_i32 = arith.constant 0 : i32
    %c0_i32_0 = arith.constant 0 : i32
    %c0_i32_1 = arith.constant 0 : i32
    return %c0_i32, %c0_i32_0 : i32, i32
  }
  func.func @transform_6(%arg0: i32) -> (i32, i32) {
    %c0_i32 = arith.constant 0 : i32
    %c0_i32_0 = arith.constant 0 : i32
    %c0_i32_1 = arith.constant 0 : i32
    return %c0_i32, %c0_i32_0 : i32, i32
  }
  func.func @transform_7(%arg0: i32) -> (i32, i32) {
    %c0_i32 = arith.constant 0 : i32
    %c0_i32_0 = arith.constant 0 : i32
    %c0_i32_1 = arith.constant 0 : i32
    return %c0_i32, %c0_i32_0 : i32, i32
  }
  func.func @transform_8(%arg0: i32) -> (i32, i32) {
    %c0_i32 = arith.constant 0 : i32
    %c0_i32_0 = arith.constant 0 : i32
    return %arg0, %c0_i32 : i32, i32
  }
}

</mosaic_0001>

<llo_original>
// kernel: squeeze.27
$region0: #{squeeze.27}
  %s0 = inlined_call_operand.vmem [shape: f32[3,1,16,16], index: 0, kind: input, shape index: {}]
  %s1 = inlined_call_operand.vmem [shape: f32[3,1,256], index: 1, kind: output, shape index: {}]
  $region1: #{squeeze.27} parent=0
    #allocation0 [shape = 'u8[24576]{0}', space=vmem, size = 0x6000, scoped, tag = 'scoped mem for output reshape']
    %v2 = vld [vmem:[%s0] ss:$8 sm:$0xf]
    %s3 = smov 48
    %v4 = vld [vmem:[%s0] ss:$8 sm:%s3]
    %vm5 = vcmask 1045508
    %v6 = vsel %vm5, %v4, %v2
    %vm7 = vcmask 130048
    %8 = vst.msk [vmem:[#allocation0] ss:$8 sm:$0xf] %vm7, %v6
    %9 = vst.msk [vmem:[#allocation0] ss:$8 sm:$0x30] %vm7, %v6
    %s10 = scalar_lea.vmem %s0, 7
    %v11 = vld [vmem:[%s10] ss:$8 sm:$0xf]
    %s12 = scalar_lea.vmem %s0, 7
    %s13 = smov 48
    %v14 = vld [vmem:[%s12] ss:$8 sm:%s13]
    %vm15 = vcmask 1045508
    %v16 = vsel %vm15, %v14, %v11
    %17 = vrot.lane.b32.xlu0 %v16, 112
    %v18 = vpop.permute.xlu0 %17
    %vm19 = vcmask 1048448
    %20 = vst.msk [vmem:[#allocation0] ss:$8 sm:$0xf] %vm19, %v18
    %21 = vst.msk [vmem:[#allocation0] ss:$8 sm:$0x30] %vm19, %v18
    %s22 = scalar_lea.vmem %s0, 6
    %v23 = vld [vmem:[%s22] ss:$8 sm:$0xf]
    %s24 = scalar_lea.vmem %s0, 6
    %s25 = smov 48
    %v26 = vld [vmem:[%s24] ss:$8 sm:%s25]
    %vm27 = vcmask 1045508
    %v28 = vsel %vm27, %v26, %v23
    %29 = vrot.lane.b32.xlu0 %v28, 96
    %v30 = vpop.permute.xlu0 %29
    %vm31 = vcmask 917248
    %32 = vst.msk [vmem:[#allocation0] ss:$8 sm:$0xf] %vm31, %v30
    %33 = vst.msk [vmem:[#allocation0] ss:$8 sm:$0x30] %vm31, %v30
    %s34 = scalar_lea.vmem %s0, 5
    %v35 = vld [vmem:[%s34] ss:$8 sm:$0xf]
    %s36 = scalar_lea.vmem %s0, 5
    %s37 = smov 48
    %v38 = vld [vmem:[%s36] ss:$8 sm:%s37]
    %vm39 = vcmask 1045508
    %v40 = vsel %vm39, %v38, %v35
    %41 = vrot.lane.b32.xlu0 %v40, 80
    %v42 = vpop.permute.xlu0 %41
    %vm43 = vcmask 786048
    %44 = vst.msk [vmem:[#allocation0] ss:$8 sm:$0xf] %vm43, %v42
    %45 = vst.msk [vmem:[#allocation0] ss:$8 sm:$0x30] %vm43, %v42
    %s46 = scalar_lea.vmem %s0, 4
    %v47 = vld [vmem:[%s46] ss:$8 sm:$0xf]
    %s48 = scalar_lea.vmem %s0, 4
    %s49 = smov 48
    %v50 = vld [vmem:[%s48] ss:$8 sm:%s49]
    %vm51 = vcmask 1045508
    %v52 = vsel %vm51, %v50, %v47
    %53 = vrot.lane.b32.xlu0 %v52, 64
    %v54 = vpop.permute.xlu0 %53
    %vm55 = vcmask 654848
    %56 = vst.msk [vmem:[#allocation0] ss:$8 sm:$0xf] %vm55, %v54
    %57 = vst.msk [vmem:[#allocation0] ss:$8 sm:$0x30] %vm55, %v54
    %s58 = scalar_lea.vmem %s0, 3
    %v59 = vld [vmem:[%s58] ss:$8 sm:$0xf]
    %s60 = scalar_lea.vmem %s0, 3
    %s61 = smov 48
    %v62 = vld [vmem:[%s60] ss:$8 sm:%s61]
    %vm63 = vcmask 1045508
    %v64 = vsel %vm63, %v62, %v59
    %65 = vrot.lane.b32.xlu0 %v64, 48
    %v66 = vpop.permute.xlu0 %65
    %vm67 = vcmask 523648
    %68 = vst.msk [vmem:[#allocation0] ss:$8 sm:$0xf] %vm67, %v66
    %69 = vst.msk [vmem:[#allocation0] ss:$8 sm:$0x30] %vm67, %v66
    %s70 = scalar_lea.vmem %s0, 2
    %v71 = vld [vmem:[%s70] ss:$8 sm:$0xf]
    %s72 = scalar_lea.vmem %s0, 2
    %s73 = smov 48
    %v74 = vld [vmem:[%s72] ss:$8 sm:%s73]
    %vm75 = vcmask 1045508
    %v76 = vsel %vm75, %v74, %v71
    %77 = vrot.lane.b32.xlu0 %v76, 32
    %v78 = vpop.permute.xlu0 %77
    %vm79 = vcmask 392448
    %80 = vst.msk [vmem:[#allocation0] ss:$8 sm:$0xf] %vm79, %v78
    %81 = vst.msk [vmem:[#allocation0] ss:$8 sm:$0x30] %vm79, %v78
    %s82 = scalar_lea.vmem %s0, 1
    %v83 = vld [vmem:[%s82] ss:$8 sm:$0xf]
    %s84 = scalar_lea.vmem %s0, 1
    %s85 = smov 48
    %v86 = vld [vmem:[%s84] ss:$8 sm:%s85]
    %vm87 = vcmask 1045508
    %v88 = vsel %vm87, %v86, %v83
    %89 = vrot.lane.b32.xlu0 %v88, 16
    %v90 = vpop.permute.xlu0 %89
    %vm91 = vcmask 261248
    %92 = vst.msk [vmem:[#allocation0] ss:$8 sm:$0xf] %vm91, %v90
    %93 = vst.msk [vmem:[#allocation0] ss:$8 sm:$0x30] %vm91, %v90
    %s95 = sshllo.u32 0, 1
    %v97 = vld [vmem:[#allocation0] sm:%s95]
    %s98 = sshllo.u32 0, 1
    %99 = vst [vmem:[%s1] sm:%s98] %v97
    %s100 = scalar_lea.vmem [#allocation0], 8
    %v101 = vld [vmem:[%s100] sm:%s95]
    %s102 = sshllo.u32 0, 1
    %s103 = scalar_lea.vmem %s1, 1
    %104 = vst [vmem:[%s103] sm:%s102] %v101
    %s105 = scalar_lea.vmem [#allocation0], 16
    %v106 = vld [vmem:[%s105] sm:%s95]
    %s107 = sshllo.u32 0, 1
    %s108 = smul.addr 1, 2
    %s109 = scalar_lea.vmem %s1, %s108
    %110 = vst [vmem:[%s109] sm:%s107] %v106
    %s111 = scalar_lea.vmem [#allocation0], 24
    %v112 = vld [vmem:[%s111] sm:%s95]
    %s113 = sshllo.u32 0, 1
    %s114 = smul.addr 1, 3
    %s115 = scalar_lea.vmem %s1, %s114
    %116 = vst [vmem:[%s115] sm:%s113] %v112
    %s117 = scalar_lea.vmem [#allocation0], 32
    %v118 = vld [vmem:[%s117] sm:%s95]
    %s119 = sshllo.u32 0, 1
    %s120 = smul.addr 1, 4
    %s121 = scalar_lea.vmem %s1, %s120
    %122 = vst [vmem:[%s121] sm:%s119] %v118
    %s123 = scalar_lea.vmem [#allocation0], 40
    %v124 = vld [vmem:[%s123] sm:%s95]
    %s125 = sshllo.u32 0, 1
    %s126 = smul.addr 1, 5
    %s127 = scalar_lea.vmem %s1, %s126
    %128 = vst [vmem:[%s127] sm:%s125] %v124

// kernel: cnn_lstm_forward.3
$region0: #{cnn_lstm_forward.3}
  #allocation0 [shape = 'u32[]', space=smem, size = 0x4, offset = 0x4, fixed_abs, tag = 'smem constant byte address 0x4 - core index']
  #allocation1 [shape = 'u32[144,128]{1,0:T(1,128)}', space=vmem, size = 0x12000, scoped, tag = 'internal scratch']
  %s0 = inlined_call_operand.vmem [shape: f32[8,128], index: 0, kind: input, shape index: {}]
  %s1 = inlined_call_operand.vmem [shape: f32[32,128], index: 1, kind: input, shape index: {}]
  %s2 = inlined_call_operand.vmem [shape: f32[1,128], index: 2, kind: input, shape index: {}]
  %s3 = inlined_call_operand.vmem [shape: f32[32,10], index: 3, kind: input, shape index: {}]
  %s4 = inlined_call_operand.vmem [shape: f32[1,10], index: 4, kind: input, shape index: {}]
  %s5 = inlined_call_operand.hbm [shape: f32[1,10], index: 5, kind: output, shape index: {}]
  %s6 = sld [smem:[#allocation0]]
  $region30: #{cnn_lstm_forward.3} parent=0
    _
  %s8 = ssub.s32 1, %s6
  %s9 = scalar_select 0, %s8, %s6
  $region1: #{cnn_lstm_forward.3} parent=0
    #allocation2 [shape = 'u8[512]{0}', space=vmem, size = 0x400, scoped, tag = 'output window, operand 0, single buffered']
    #allocation3 [shape = 's32[1]{0}', space=sflag, size = 0x4, scoped, tag = 'scoped memory for cnn_lstm_forward.3']
    %10 = vsyncpa [#allocation3], 0
    // Predicated region
    $region2: #{cnn_lstm_forward.3} parent=1 // pred_check
      _
    $region3: #{cnn_lstm_forward.3} parent=1 // pred_check_branch
      %12 = sbr.rel (0) target = $region5
    $region4: #{cnn_lstm_forward.3} parent=1 // pred_region
      _
    $region5: #{cnn_lstm_forward.3} parent=1 // pred_fallthru
      _
    // Predicated region
    $region6: #{cnn_lstm_forward.3} parent=1 // pred_check
      _
    $region7: #{cnn_lstm_forward.3} parent=1 // pred_check_branch
      %14 = sbr.rel (0) target = $region9
    $region8: #{cnn_lstm_forward.3} parent=1 // pred_region
      _
    $region9: #{cnn_lstm_forward.3} parent=1 // pred_fallthru
      _
    // Predicated region
    $region10: #{cnn_lstm_forward.3} parent=1 // pred_check
      _
    $region11: #{cnn_lstm_forward.3} parent=1 // pred_check_branch
      %16 = sbr.rel (0) target = $region13
    $region12: #{cnn_lstm_forward.3} parent=1 // pred_region
      _
    $region13: #{cnn_lstm_forward.3} parent=1 // pred_fallthru
      _
    // Predicated region
    $region14: #{cnn_lstm_forward.3} parent=1 // pred_check
      _
    $region15: #{cnn_lstm_forward.3} parent=1 // pred_check_branch
      %18 = sbr.rel (0) target = $region17
    $region16: #{cnn_lstm_forward.3} parent=1 // pred_region
      _
    $region17: #{cnn_lstm_forward.3} parent=1 // pred_fallthru
      _
    // Predicated region
    $region18: #{cnn_lstm_forward.3} parent=1 // pred_check
      _
    $region19: #{cnn_lstm_forward.3} parent=1 // pred_check_branch
      %20 = sbr.rel (0) target = $region21
    $region20: #{cnn_lstm_forward.3} parent=1 // pred_region
      _
    $region21: #{cnn_lstm_forward.3} parent=1 // pred_fallthru
      _
    %v21 = vld [vmem:[%s1] sm:$0xff]
    %v22 = vld [vmem:[%s1 + $0x8] sm:$0xff]
    %v23 = vld [vmem:[%s1 + $0x10] sm:$0xff]
    %v24 = vld [vmem:[%s1 + $0x18] sm:$0xff]
    %v25 = vld [vmem:[%s2] sm:$0x1]
    %v26 = vld [vmem:[%s0] sm:$0x1]
    %vm27 = vcmask 261120
    %v29 = vsel %vm27, 0.0, 0
    %31 = vmatprep.subr.mxu0 0.0
    %32 = vmatpush1.msra.mxu0 %v21
    %33 = vmatprep.subr.mxu0 0.0
    %34 = vmatpush1.msra.mxu0 %v22
    %35 = vmatprep.subr.mxu0 0.0
    %36 = vmatpush1.msra.mxu0 %v23
    %37 = vmatprep.subr.mxu0 0.0
    %38 = vmatpush1.msra.mxu0 %v24
    %39 = vmatprep.subr.mxu0 0.0
    %40 = vmatpush1.msra.mxu0 0.0
    %41 = vmatprep.subr.mxu0 0.0
    %42 = vmatpush1.msra.mxu0 0.0
    %43 = vmatprep.subr.mxu0 0.0
    %44 = vmatpush1.msra.mxu0 0.0
    %45 = vmatprep.subr.mxu0 0.0
    %46 = vmatpush1.msra.mxu0 0.0
    %47 = vmatprep.subr.mxu0 0.0
    %48 = vmatpush1.msra.mxu0 0.0
    %49 = vmatprep.subr.mxu0 0.0
    %50 = vmatpush1.msra.mxu0 0.0
    %51 = vmatprep.subr.mxu0 0.0
    %52 = vmatpush1.msra.mxu0 0.0
    %53 = vmatprep.subr.mxu0 0.0
    %54 = vmatpush1.msra.mxu0 0.0
    %55 = vmatprep.subr.mxu0 0.0
    %56 = vmatpush1.msra.mxu0 0.0
    %57 = vmatprep.subr.mxu0 0.0
    %58 = vmatpush1.msra.mxu0 0.0
    %59 = vmatprep.subr.mxu0 0.0
    %60 = vmatpush1.msra.mxu0 0.0
    %61 = vmatprep.subr.mxu0 0.0
    %62 = vmatpush1.msra.mxu0 0.0
    %63 = vmatprep.subr.mxu0 0.0
    %64 = vmatpush1.msra.mxu0 0.0
    %65 = vmatprep.subr.mxu0 0.0
    %66 = vmatpush1.msra.mxu0 0.0
    %67 = vmatprep.subr.mxu0 0.0
    %68 = vmatpush1.msra.mxu0 0.0
    %69 = vmatprep.subr.mxu0 0.0
    %70 = vmatpush1.msra.mxu0 0.0
    %71 = vmatprep.subr.mxu0 0.0
    %72 = vmatpush1.msra.mxu0 0.0
    %73 = vmatprep.subr.mxu0 0.0
    %74 = vmatpush1.msra.mxu0 0.0
    %75 = vmatprep.subr.mxu0 0.0
    %76 = vmatpush1.msra.mxu0 0.0
    %77 = vmatprep.subr.mxu0 0.0
    %78 = vmatpush1.msra.mxu0 0.0
    %79 = vmatprep.subr.mxu0 0.0
    %80 = vmatpush1.msra.mxu0 0.0
    %81 = vmatprep.subr.mxu0 0.0
    %82 = vmatpush1.msra.mxu0 0.0
    %83 = vmatprep.subr.mxu0 0.0
    %84 = vmatpush1.msra.mxu0 0.0
    %85 = vmatprep.subr.mxu0 0.0
    %86 = vmatpush1.msra.mxu0 0.0
    %87 = vmatprep.subr.mxu0 0.0
    %88 = vmatpush1.msra.mxu0 0.0
    %89 = vmatprep.subr.mxu0 0.0
    %90 = vmatpush1.msra.mxu0 0.0
    %91 = vmatprep.subr.mxu0 0.0
    %92 = vmatpush1.msra.mxu0 0.0
    %93 = vmatprep.subr.mxu0 0.0
    %94 = vmatpush1.msra.mxu0 0.0
    %95 = vmatprep.mubr.f32.mxu0 0.0
    %96 = vmatmul.mubr.f32.gmra.mrb[0].mxu0 %v29
    %v97 = vpop.f32.mrb[0].mxu0
    %v98 = vadd.f32 %v25, %v97
    %v99 = vpop.f32.mrb[0].mxu0
    %100 = vdwg.mxu0
    %v101 = vadd.f32 %v26, %v98
    %v102 = vxor.u32 %v101, 2147483648
    %v103 = vmul.f32 %v102, 1.442695
    %v104 = vpow.pop %v103
    %v105 = vadd.f32 %v104, 1.0
    %v106 = vrcp.pop %v105
    %v107 = vmul.f32 1.0, %v106
    %109 = vrot.lane.b32.xlu0 %v98, 64
    %v110 = vpop.permute.xlu0 %109
    %v112 = vmul.f32 %v107, %v110
    %114 = vrot.lane.b32.xlu0 %v112, 64
    %v115 = vpop.permute.xlu0 %114
    %v117 = vadd.f32 %v26, %v115
    %v118 = vtanh.pop %v117
    %v119 = vsub.f32 1.0, %v107
    %121 = vrot.lane.b32.xlu0 %v118, 96
    %v122 = vpop.permute.xlu0 %121
    %v124 = vmul.f32 %v119, %v122
    %v125 = vmul.f32 %v107, 0.0
    %v126 = vadd.f32 %v124, %v125
    %v127 = vld [vmem:[%s0 + $0x1] sm:$0x1]
    %129 = vrot.lane.b32.xlu0 %v126, 96
    %v130 = vpop.permute.xlu0 %129
    %v131 = vsel %vm27, %v130, 0
    %133 = vmatprep.subr.mxu0 0.0
    %134 = vmatpush1.msra.mxu0 %v21
    %135 = vmatprep.subr.mxu0 0.0
    %136 = vmatpush1.msra.mxu0 %v22
    %137 = vmatprep.subr.mxu0 0.0
    %138 = vmatpush1.msra.mxu0 %v23
    %139 = vmatprep.subr.mxu0 0.0
    %140 = vmatpush1.msra.mxu0 %v24
    %141 = vmatprep.subr.mxu0 0.0
    %142 = vmatpush1.msra.mxu0 0.0
    %143 = vmatprep.subr.mxu0 0.0
    %144 = vmatpush1.msra.mxu0 0.0
    %145 = vmatprep.subr.mxu0 0.0
    %146 = vmatpush1.msra.mxu0 0.0
    %147 = vmatprep.subr.mxu0 0.0
    %148 = vmatpush1.msra.mxu0 0.0
    %149 = vmatprep.subr.mxu0 0.0
    %150 = vmatpush1.msra.mxu0 0.0
    %151 = vmatprep.subr.mxu0 0.0
    %152 = vmatpush1.msra.mxu0 0.0
    %153 = vmatprep.subr.mxu0 0.0
    %154 = vmatpush1.msra.mxu0 0.0
    %155 = vmatprep.subr.mxu0 0.0
    %156 = vmatpush1.msra.mxu0 0.0
    %157 = vmatprep.subr.mxu0 0.0
    %158 = vmatpush1.msra.mxu0 0.0
    %159 = vmatprep.subr.mxu0 0.0
    %160 = vmatpush1.msra.mxu0 0.0
    %161 = vmatprep.subr.mxu0 0.0
    %162 = vmatpush1.msra.mxu0 0.0
    %163 = vmatprep.subr.mxu0 0.0
    %164 = vmatpush1.msra.mxu0 0.0
    %165 = vmatprep.subr.mxu0 0.0
    %166 = vmatpush1.msra.mxu0 0.0
    %167 = vmatprep.subr.mxu0 0.0
    %168 = vmatpush1.msra.mxu0 0.0
    %169 = vmatprep.subr.mxu0 0.0
    %170 = vmatpush1.msra.mxu0 0.0
    %171 = vmatprep.subr.mxu0 0.0
    %172 = vmatpush1.msra.mxu0 0.0
    %173 = vmatprep.subr.mxu0 0.0
    %174 = vmatpush1.msra.mxu0 0.0
    %175 = vmatprep.subr.mxu0 0.0
    %176 = vmatpush1.msra.mxu0 0.0
    %177 = vmatprep.subr.mxu0 0.0
    %178 = vmatpush1.msra.mxu0 0.0
    %179 = vmatprep.subr.mxu0 0.0
    %180 = vmatpush1.msra.mxu0 0.0
    %181 = vmatprep.subr.mxu0 0.0
    %182 = vmatpush1.msra.mxu0 0.0
    %183 = vmatprep.subr.mxu0 0.0
    %184 = vmatpush1.msra.mxu0 0.0
    %185 = vmatprep.subr.mxu0 0.0
    %186 = vmatpush1.msra.mxu0 0.0
    %187 = vmatprep.subr.mxu0 0.0
    %188 = vmatpush1.msra.mxu0 0.0
    %189 = vmatprep.subr.mxu0 0.0
    %190 = vmatpush1.msra.mxu0 0.0
    %191 = vmatprep.subr.mxu0 0.0
    %192 = vmatpush1.msra.mxu0 0.0
    %193 = vmatprep.subr.mxu0 0.0
    %194 = vmatpush1.msra.mxu0 0.0
    %195 = vmatprep.subr.mxu0 0.0
    %196 = vmatpush1.msra.mxu0 0.0
    %197 = vmatprep.mubr.f32.mxu0 0.0
    %198 = vmatmul.mubr.f32.gmra.mrb[0].mxu0 %v131
    %v199 = vpop.f32.mrb[0].mxu0
    %v200 = vadd.f32 %v25, %v199
    %v201 = vpop.f32.mrb[0].mxu0
    %202 = vdwg.mxu0
    %v203 = vadd.f32 %v127, %v200
    %v204 = vxor.u32 %v203, 2147483648
    %v205 = vmul.f32 %v204, 1.442695
    %v206 = vpow.pop %v205
    %v207 = vadd.f32 %v206, 1.0
    %v208 = vrcp.pop %v207
    %v209 = vmul.f32 1.0, %v208
    %211 = vrot.lane.b32.xlu0 %v200, 64
    %v212 = vpop.permute.xlu0 %211
    %v214 = vmul.f32 %v209, %v212
    %216 = vrot.lane.b32.xlu0 %v214, 64
    %v217 = vpop.permute.xlu0 %216
    %v219 = vadd.f32 %v127, %v217
    %v220 = vtanh.pop %v219
    %v221 = vsub.f32 1.0, %v209
    %223 = vrot.lane.b32.xlu0 %v220, 96
    %v224 = vpop.permute.xlu0 %223
    %v226 = vmul.f32 %v221, %v224
    %v227 = vmul.f32 %v209, %v126
    %v228 = vadd.f32 %v226, %v227
    %v229 = vld [vmem:[%s0 + $0x2] sm:$0x1]
    %231 = vrot.lane.b32.xlu0 %v228, 96
    %v232 = vpop.permute.xlu0 %231
    %v233 = vsel %vm27, %v232, 0
    %235 = vmatprep.subr.mxu0 0.0
    %236 = vmatpush1.msra.mxu0 %v21
    %237 = vmatprep.subr.mxu0 0.0
    %238 = vmatpush1.msra.mxu0 %v22
    %239 = vmatprep.subr.mxu0 0.0
    %240 = vmatpush1.msra.mxu0 %v23
    %241 = vmatprep.subr.mxu0 0.0
    %242 = vmatpush1.msra.mxu0 %v24
    %243 = vmatprep.subr.mxu0 0.0
    %244 = vmatpush1.msra.mxu0 0.0
    %245 = vmatprep.subr.mxu0 0.0
    %246 = vmatpush1.msra.mxu0 0.0
    %247 = vmatprep.subr.mxu0 0.0
    %248 = vmatpush1.msra.mxu0 0.0
    %249 = vmatprep.subr.mxu0 0.0
    %250 = vmatpush1.msra.mxu0 0.0
    %251 = vmatprep.subr.mxu0 0.0
    %252 = vmatpush1.msra.mxu0 0.0
    %253 = vmatprep.subr.mxu0 0.0
    %254 = vmatpush1.msra.mxu0 0.0
    %255 = vmatprep.subr.mxu0 0.0
    %256 = vmatpush1.msra.mxu0 0.0
    %257 = vmatprep.subr.mxu0 0.0
    %258 = vmatpush1.msra.mxu0 0.0
    %259 = vmatprep.subr.mxu0 0.0
    %260 = vmatpush1.msra.mxu0 0.0
    %261 = vmatprep.subr.mxu0 0.0
    %262 = vmatpush1.msra.mxu0 0.0
    %263 = vmatprep.subr.mxu0 0.0
    %264 = vmatpush1.msra.mxu0 0.0
    %265 = vmatprep.subr.mxu0 0.0
    %266 = vmatpush1.msra.mxu0 0.0
    %267 = vmatprep.subr.mxu0 0.0
    %268 = vmatpush1.msra.mxu0 0.0
    %269 = vmatprep.subr.mxu0 0.0
    %270 = vmatpush1.msra.mxu0 0.0
    %271 = vmatprep.subr.mxu0 0.0
    %272 = vmatpush1.msra.mxu0 0.0
    %273 = vmatprep.subr.mxu0 0.0
    %274 = vmatpush1.msra.mxu0 0.0
    %275 = vmatprep.subr.mxu0 0.0
    %276 = vmatpush1.msra.mxu0 0.0
    %277 = vmatprep.subr.mxu0 0.0
    %278 = vmatpush1.msra.mxu0 0.0
    %279 = vmatprep.subr.mxu0 0.0
    %280 = vmatpush1.msra.mxu0 0.0
    %281 = vmatprep.subr.mxu0 0.0
    %282 = vmatpush1.msra.mxu0 0.0
    %283 = vmatprep.subr.mxu0 0.0
    %284 = vmatpush1.msra.mxu0 0.0
    %285 = vmatprep.subr.mxu0 0.0
    %286 = vmatpush1.msra.mxu0 0.0
    %287 = vmatprep.subr.mxu0 0.0
    %288 = vmatpush1.msra.mxu0 0.0
    %289 = vmatprep.subr.mxu0 0.0
    %290 = vmatpush1.msra.mxu0 0.0
    %291 = vmatprep.subr.mxu0 0.0
    %292 = vmatpush1.msra.mxu0 0.0
    %293 = vmatprep.subr.mxu0 0.0
    %294 = vmatpush1.msra.mxu0 0.0
    %295 = vmatprep.subr.mxu0 0.0
    %296 = vmatpush1.msra.mxu0 0.0
    %297 = vmatprep.subr.mxu0 0.0
    %298 = vmatpush1.msra.mxu0 0.0
    %299 = vmatprep.mubr.f32.mxu0 0.0
    %300 = vmatmul.mubr.f32.gmra.mrb[0].mxu0 %v233
    %v301 = vpop.f32.mrb[0].mxu0
    %v302 = vadd.f32 %v25, %v301
    %v303 = vpop.f32.mrb[0].mxu0
    %304 = vdwg.mxu0
    %v305 = vadd.f32 %v229, %v302
    %v306 = vxor.u32 %v305, 2147483648
    %v307 = vmul.f32 %v306, 1.442695
    %v308 = vpow.pop %v307
    %v309 = vadd.f32 %v308, 1.0
    %v310 = vrcp.pop %v309
    %v311 = vmul.f32 1.0, %v310
    %313 = vrot.lane.b32.xlu0 %v302, 64
    %v314 = vpop.permute.xlu0 %313
    %v316 = vmul.f32 %v311, %v314
    %318 = vrot.lane.b32.xlu0 %v316, 64
    %v319 = vpop.permute.xlu0 %318
    %v321 = vadd.f32 %v229, %v319
    %v322 = vtanh.pop %v321
    %v323 = vsub.f32 1.0, %v311
    %325 = vrot.lane.b32.xlu0 %v322, 96
    %v326 = vpop.permute.xlu0 %325
    %v328 = vmul.f32 %v323, %v326
    %v329 = vmul.f32 %v311, %v228
    %v330 = vadd.f32 %v328, %v329
    %v331 = vld [vmem:[%s3] sm:$0xff]
    %v332 = vld [vmem:[%s3 + $0x8] sm:$0xff]
    %v333 = vld [vmem:[%s3 + $0x10] sm:$0xff]
    %v334 = vld [vmem:[%s3 + $0x18] sm:$0xff]
    %v335 = vld [vmem:[%s4] sm:$0x1]
    %337 = vrot.lane.b32.xlu0 %v330, 96
    %v338 = vpop.permute.xlu0 %337
    %v339 = vsel %vm27, %v338, 0
    %341 = vmatprep.subr.mxu0 0.0
    %342 = vmatpush1.msra.mxu0 %v331
    %343 = vmatprep.subr.mxu0 0.0
    %344 = vmatpush1.msra.mxu0 %v332
    %345 = vmatprep.subr.mxu0 0.0
    %346 = vmatpush1.msra.mxu0 %v333
    %347 = vmatprep.subr.mxu0 0.0
    %348 = vmatpush1.msra.mxu0 %v334
    %349 = vmatprep.subr.mxu0 0.0
    %350 = vmatpush1.msra.mxu0 0.0
    %351 = vmatprep.subr.mxu0 0.0
    %352 = vmatpush1.msra.mxu0 0.0
    %353 = vmatprep.subr.mxu0 0.0
    %354 = vmatpush1.msra.mxu0 0.0
    %355 = vmatprep.subr.mxu0 0.0
    %356 = vmatpush1.msra.mxu0 0.0
    %357 = vmatprep.subr.mxu0 0.0
    %358 = vmatpush1.msra.mxu0 0.0
    %359 = vmatprep.subr.mxu0 0.0
    %360 = vmatpush1.msra.mxu0 0.0
    %361 = vmatprep.subr.mxu0 0.0
    %362 = vmatpush1.msra.mxu0 0.0
    %363 = vmatprep.subr.mxu0 0.0
    %364 = vmatpush1.msra.mxu0 0.0
    %365 = vmatprep.subr.mxu0 0.0
    %366 = vmatpush1.msra.mxu0 0.0
    %367 = vmatprep.subr.mxu0 0.0
    %368 = vmatpush1.msra.mxu0 0.0
    %369 = vmatprep.subr.mxu0 0.0
    %370 = vmatpush1.msra.mxu0 0.0
    %371 = vmatprep.subr.mxu0 0.0
    %372 = vmatpush1.msra.mxu0 0.0
    %373 = vmatprep.subr.mxu0 0.0
    %374 = vmatpush1.msra.mxu0 0.0
    %375 = vmatprep.subr.mxu0 0.0
    %376 = vmatpush1.msra.mxu0 0.0
    %377 = vmatprep.subr.mxu0 0.0
    %378 = vmatpush1.msra.mxu0 0.0
    %379 = vmatprep.subr.mxu0 0.0
    %380 = vmatpush1.msra.mxu0 0.0
    %381 = vmatprep.subr.mxu0 0.0
    %382 = vmatpush1.msra.mxu0 0.0
    %383 = vmatprep.subr.mxu0 0.0
    %384 = vmatpush1.msra.mxu0 0.0
    %385 = vmatprep.subr.mxu0 0.0
    %386 = vmatpush1.msra.mxu0 0.0
    %387 = vmatprep.subr.mxu0 0.0
    %388 = vmatpush1.msra.mxu0 0.0
    %389 = vmatprep.subr.mxu0 0.0
    %390 = vmatpush1.msra.mxu0 0.0
    %391 = vmatprep.subr.mxu0 0.0
    %392 = vmatpush1.msra.mxu0 0.0
    %393 = vmatprep.subr.mxu0 0.0
    %394 = vmatpush1.msra.mxu0 0.0
    %395 = vmatprep.subr.mxu0 0.0
    %396 = vmatpush1.msra.mxu0 0.0
    %397 = vmatprep.subr.mxu0 0.0
    %398 = vmatpush1.msra.mxu0 0.0
    %399 = vmatprep.subr.mxu0 0.0
    %400 = vmatpush1.msra.mxu0 0.0
    %401 = vmatprep.subr.mxu0 0.0
    %402 = vmatpush1.msra.mxu0 0.0
    %403 = vmatprep.subr.mxu0 0.0
    %404 = vmatpush1.msra.mxu0 0.0
    %405 = vmatprep.mubr.f32.mxu0 0.0
    %406 = vmatmul.mubr.f32.gmra.mrb[0].mxu0 %v339
    %v407 = vpop.f32.mrb[0].mxu0
    %v408 = vadd.f32 %v335, %v407
    %v409 = vpop.f32.mrb[0].mxu0
    %410 = vdwg.mxu0
    %vm411 = vcmask 73728
    %412 = vst.msk [vmem:[#allocation2] sm:$0x1] %vm411, %v408
    // Predicated region
    $region22: #{cnn_lstm_forward.3} parent=1 // pred_check
      _
    $region23: #{cnn_lstm_forward.3} parent=1 // pred_check_branch
      %414 = sbr.rel (0) target = $region25
    $region24: #{cnn_lstm_forward.3} parent=1 // pred_region
      %s416 = ssub.s32 16, 16
      %417 = vsyncadd [#allocation3], %s416
      %s419 = sshll.u32 [#allocation2], 4
      %s420 = int_to_ptr.vmem [resolvable:$true] %s419
      %422 = dma.vmem_to_hbm [thread:$0]  %s420, 16, %s5, [#allocation3]
    $region25: #{cnn_lstm_forward.3} parent=1 // pred_fallthru
      _
    // Predicated region
    $region26: #{cnn_lstm_forward.3} parent=1 // pred_check
      _
    $region27: #{cnn_lstm_forward.3} parent=1 // pred_check_branch
      %424 = sbr.rel (0) target = $region29
    $region28: #{cnn_lstm_forward.3} parent=1 // pred_region
      %425 = dma.done [#allocation3], 16
    $region29: #{cnn_lstm_forward.3} parent=1 // pred_fallthru
      _
    %426 = vsyncpa [#allocation3], 1

// kernel: cnn_lstm_forward.2
$region0: #{cnn_lstm_forward.2}
  #allocation0 [shape = 'u32[]', space=smem, size = 0x4, offset = 0x4, fixed_abs, tag = 'smem constant byte address 0x4 - core index']
  #allocation1 [shape = 'u32[144,128]{1,0:T(1,128)}', space=vmem, size = 0x12000, scoped, tag = 'internal scratch']
  %s0 = inlined_call_operand.vmem [shape: f32[1,32,2048], index: 0, kind: input, shape index: {}]
  %s1 = inlined_call_operand.vmem [shape: f32[8,32], index: 1, kind: input, shape index: {}]
  %s2 = inlined_call_operand.vmem [shape: f32[256,128], index: 2, kind: input, shape index: {}]
  %s3 = inlined_call_operand.vmem [shape: f32[8,128], index: 3, kind: input, shape index: {}]
  %s4 = inlined_call_operand.vmem [shape: f32[1,128], index: 4, kind: input, shape index: {}]
  %s5 = inlined_call_operand.vmem [shape: f32[1,128], index: 5, kind: input, shape index: {}]
  %s6 = inlined_call_operand.vmem [shape: f32[128,128], index: 6, kind: input, shape index: {}]
  %s7 = inlined_call_operand.vmem [shape: f32[1,128], index: 7, kind: input, shape index: {}]
  %s8 = inlined_call_operand.vmem [shape: f32[8,128], index: 8, kind: output, shape index: {}]
  %s9 = sld [smem:[#allocation0]]
  $region42: #{cnn_lstm_forward.2} parent=0
    _
  %s11 = ssub.s32 1, %s9
  %s12 = scalar_select 0, %s11, %s9
  // Predicated region
  $region2: #{cnn_lstm_forward.2} parent=0 // pred_check
    _
  $region3: #{cnn_lstm_forward.2} parent=0 // pred_check_branch
    %14 = sbr.rel (0) target = $region5
  $region4: #{cnn_lstm_forward.2} parent=0 // pred_region
    _
  $region5: #{cnn_lstm_forward.2} parent=0 // pred_fallthru
    _
  // Predicated region
  $region6: #{cnn_lstm_forward.2} parent=0 // pred_check
    _
  $region7: #{cnn_lstm_forward.2} parent=0 // pred_check_branch
    %16 = sbr.rel (0) target = $region9
  $region8: #{cnn_lstm_forward.2} parent=0 // pred_region
    _
  $region9: #{cnn_lstm_forward.2} parent=0 // pred_fallthru
    _
  // Predicated region
  $region10: #{cnn_lstm_forward.2} parent=0 // pred_check
    _
  $region11: #{cnn_lstm_forward.2} parent=0 // pred_check_branch
    %18 = sbr.rel (0) target = $region13
  $region12: #{cnn_lstm_forward.2} parent=0 // pred_region
    _
  $region13: #{cnn_lstm_forward.2} parent=0 // pred_fallthru
    _
  // Predicated region
  $region14: #{cnn_lstm_forward.2} parent=0 // pred_check
    _
  $region15: #{cnn_lstm_forward.2} parent=0 // pred_check_branch
    %20 = sbr.rel (0) target = $region17
  $region16: #{cnn_lstm_forward.2} parent=0 // pred_region
    _
  $region17: #{cnn_lstm_forward.2} parent=0 // pred_fallthru
    _
  // Predicated region
  $region18: #{cnn_lstm_forward.2} parent=0 // pred_check
    _
  $region19: #{cnn_lstm_forward.2} parent=0 // pred_check_branch
    %22 = sbr.rel (0) target = $region21
  $region20: #{cnn_lstm_forward.2} parent=0 // pred_region
    _
  $region21: #{cnn_lstm_forward.2} parent=0 // pred_fallthru
    _
  // Predicated region
  $region22: #{cnn_lstm_forward.2} parent=0 // pred_check
    _
  $region23: #{cnn_lstm_forward.2} parent=0 // pred_check_branch
    %24 = sbr.rel (0) target = $region25
  $region24: #{cnn_lstm_forward.2} parent=0 // pred_region
    _
  $region25: #{cnn_lstm_forward.2} parent=0 // pred_fallthru
    _
  // Predicated region
  $region26: #{cnn_lstm_forward.2} parent=0 // pred_check
    _
  $region27: #{cnn_lstm_forward.2} parent=0 // pred_check_branch
    %26 = sbr.rel (0) target = $region29
  $region28: #{cnn_lstm_forward.2} parent=0 // pred_region
    _
  $region29: #{cnn_lstm_forward.2} parent=0 // pred_fallthru
    _
  // Predicated region
  $region30: #{cnn_lstm_forward.2} parent=0 // pred_check
    _
  $region31: #{cnn_lstm_forward.2} parent=0 // pred_check_branch
    %28 = sbr.rel (0) target = $region33
  $region32: #{cnn_lstm_forward.2} parent=0 // pred_region
    _
  $region33: #{cnn_lstm_forward.2} parent=0 // pred_fallthru
    _
  %v29 = vld [vmem:[%s1] sm:$0xff]
  %v30 = vld [vmem:[%s0] sm:$0xff]
  %v31 = vld [vmem:[%s0 + $0x8] sm:$0xff]
  %v32 = vld [vmem:[%s0 + $0x10] sm:$0xff]
  %v33 = vld [vmem:[%s0 + $0x18] sm:$0xff]
  %v34 = vld [vmem:[%s0 + $0x20] sm:$0xff]
  %v35 = vld [vmem:[%s0 + $0x28] sm:$0xff]
  %v36 = vld [vmem:[%s0 + $0x30] sm:$0xff]
  %v37 = vld [vmem:[%s0 + $0x38] sm:$0xff]
  %v38 = vld [vmem:[%s0 + $0x40] sm:$0xff]
  %v39 = vld [vmem:[%s0 + $0x48] sm:$0xff]
  %v40 = vld [vmem:[%s0 + $0x50] sm:$0xff]
  %v41 = vld [vmem:[%s0 + $0x58] sm:$0xff]
  %v42 = vld [vmem:[%s0 + $0x60] sm:$0xff]
  %v43 = vld [vmem:[%s0 + $0x68] sm:$0xff]
  %v44 = vld [vmem:[%s0 + $0x70] sm:$0xff]
  %v45 = vld [vmem:[%s0 + $0x78] sm:$0xff]
  %v46 = vld [vmem:[%s0 + $0x80] sm:$0xff]
  %v47 = vld [vmem:[%s0 + $0x88] sm:$0xff]
  %v48 = vld [vmem:[%s0 + $0x90] sm:$0xff]
  %v49 = vld [vmem:[%s0 + $0x98] sm:$0xff]
  %v50 = vld [vmem:[%s0 + $0xa0] sm:$0xff]
  %v51 = vld [vmem:[%s0 + $0xa8] sm:$0xff]
  %v52 = vld [vmem:[%s0 + $0xb0] sm:$0xff]
  %v53 = vld [vmem:[%s0 + $0xb8] sm:$0xff]
  %v54 = vld [vmem:[%s0 + $0xc0] sm:$0xff]
  %v55 = vld [vmem:[%s0 + $0xc8] sm:$0xff]
  %v56 = vld [vmem:[%s0 + $0xd0] sm:$0xff]
  %v57 = vld [vmem:[%s0 + $0xd8] sm:$0xff]
  %v58 = vld [vmem:[%s0 + $0xe0] sm:$0xff]
  %v59 = vld [vmem:[%s0 + $0xe8] sm:$0xff]
  %v60 = vld [vmem:[%s0 + $0xf0] sm:$0xff]
  %v61 = vld [vmem:[%s0 + $0xf8] sm:$0xff]
  %v62 = vld [vmem:[%s0 + $0x100] sm:$0xff]
  %v63 = vld [vmem:[%s0 + $0x108] sm:$0xff]
  %v64 = vld [vmem:[%s0 + $0x110] sm:$0xff]
  %v65 = vld [vmem:[%s0 + $0x118] sm:$0xff]
  %v66 = vld [vmem:[%s0 + $0x120] sm:$0xff]
  %v67 = vld [vmem:[%s0 + $0x128] sm:$0xff]
  %v68 = vld [vmem:[%s0 + $0x130] sm:$0xff]
  %v69 = vld [vmem:[%s0 + $0x138] sm:$0xff]
  %v70 = vld [vmem:[%s0 + $0x140] sm:$0xff]
  %v71 = vld [vmem:[%s0 + $0x148] sm:$0xff]
  %v72 = vld [vmem:[%s0 + $0x150] sm:$0xff]
  %v73 = vld [vmem:[%s0 + $0x158] sm:$0xff]
  %v74 = vld [vmem:[%s0 + $0x160] sm:$0xff]
  %v75 = vld [vmem:[%s0 + $0x168] sm:$0xff]
  %v76 = vld [vmem:[%s0 + $0x170] sm:$0xff]
  %v77 = vld [vmem:[%s0 + $0x178] sm:$0xff]
  %v78 = vld [vmem:[%s0 + $0x180] sm:$0xff]
  %v79 = vld [vmem:[%s0 + $0x188] sm:$0xff]
  %v80 = vld [vmem:[%s0 + $0x190] sm:$0xff]
  %v81 = vld [vmem:[%s0 + $0x198] sm:$0xff]
  %v82 = vld [vmem:[%s0 + $0x1a0] sm:$0xff]
  %v83 = vld [vmem:[%s0 + $0x1a8] sm:$0xff]
  %v84 = vld [vmem:[%s0 + $0x1b0] sm:$0xff]
  %v85 = vld [vmem:[%s0 + $0x1b8] sm:$0xff]
  %v86 = vld [vmem:[%s0 + $0x1c0] sm:$0xff]
  %v87 = vld [vmem:[%s0 + $0x1c8] sm:$0xff]
  %v88 = vld [vmem:[%s0 + $0x1d0] sm:$0xff]
  %v89 = vld [vmem:[%s0 + $0x1d8] sm:$0xff]
  %v90 = vld [vmem:[%s0 + $0x1e0] sm:$0xff]
  %v91 = vld [vmem:[%s0 + $0x1e8] sm:$0xff]
  %v92 = vld [vmem:[%s0 + $0x1f0] sm:$0xff]
  %v93 = vld [vmem:[%s0 + $0x1f8] sm:$0xff]
  %vm94 = vcmask 261120
  %v96 = vsel %vm94, %v29, 0
  %98 = vmatprep.subr.mxu0 %v31
  %99 = vmatpush1.msra.mxu0 %v30
  %100 = vmatprep.subr.mxu0 %v47
  %101 = vmatpush1.msra.mxu0 %v46
  %102 = vmatprep.subr.mxu0 %v63
  %103 = vmatpush1.msra.mxu0 %v62
  %104 = vmatprep.subr.mxu0 %v79
  %105 = vmatpush1.msra.mxu0 %v78
  %106 = vmatprep.subr.mxu0 0.0
  %107 = vmatpush1.msra.mxu0 0.0
  %108 = vmatprep.subr.mxu0 0.0
  %109 = vmatpush1.msra.mxu0 0.0
  %110 = vmatprep.subr.mxu0 0.0
  %111 = vmatpush1.msra.mxu0 0.0
  %112 = vmatprep.subr.mxu0 0.0
  %113 = vmatpush1.msra.mxu0 0.0
  %114 = vmatprep.subr.mxu0 0.0
  %115 = vmatpush1.msra.mxu0 0.0
  %116 = vmatprep.subr.mxu0 0.0
  %117 = vmatpush1.msra.mxu0 0.0
  %118 = vmatprep.subr.mxu0 0.0
  %119 = vmatpush1.msra.mxu0 0.0
  %120 = vmatprep.subr.mxu0 0.0
  %121 = vmatpush1.msra.mxu0 0.0
  %122 = vmatprep.subr.mxu0 0.0
  %123 = vmatpush1.msra.mxu0 0.0
  %124 = vmatprep.subr.mxu0 0.0
  %125 = vmatpush1.msra.mxu0 0.0
  %126 = vmatprep.subr.mxu0 0.0
  %127 = vmatpush1.msra.mxu0 0.0
  %128 = vmatprep.subr.mxu0 0.0
  %129 = vmatpush1.msra.mxu0 0.0
  %130 = vmatprep.subr.mxu0 0.0
  %131 = vmatpush1.msra.mxu0 0.0
  %132 = vmatprep.subr.mxu0 0.0
  %133 = vmatpush1.msra.mxu0 0.0
  %134 = vmatprep.subr.mxu0 0.0
  %135 = vmatpush1.msra.mxu0 0.0
  %136 = vmatprep.subr.mxu0 0.0
  %137 = vmatpush1.msra.mxu0 0.0
  %138 = vmatprep.subr.mxu0 0.0
  %139 = vmatpush1.msra.mxu0 0.0
  %140 = vmatprep.subr.mxu0 0.0
  %141 = vmatpush1.msra.mxu0 0.0
  %142 = vmatprep.subr.mxu0 0.0
  %143 = vmatpush1.msra.mxu0 0.0
  %144 = vmatprep.subr.mxu0 0.0
  %145 = vmatpush1.msra.mxu0 0.0
  %146 = vmatprep.subr.mxu0 0.0
  %147 = vmatpush1.msra.mxu0 0.0
  %148 = vmatprep.subr.mxu0 0.0
  %149 = vmatpush1.msra.mxu0 0.0
  %150 = vmatprep.subr.mxu0 0.0
  %151 = vmatpush1.msra.mxu0 0.0
  %152 = vmatprep.subr.mxu0 0.0
  %153 = vmatpush1.msra.mxu0 0.0
  %154 = vmatprep.subr.mxu0 0.0
  %155 = vmatpush1.msra.mxu0 0.0
  %156 = vmatprep.subr.mxu0 0.0
  %157 = vmatpush1.msra.mxu0 0.0
  %158 = vmatprep.subr.mxu0 0.0
  %159 = vmatpush1.msra.mxu0 0.0
  %160 = vmatprep.subr.mxu0 0.0
  %161 = vmatpush1.msra.mxu0 0.0
  %162 = vmatprep.mubr.f32.mxu0 0.0
  %163 = vmatmul.mubr.f32.gmra.mrb[0].mxu0 %v96
  %v164 = vpop.f32.mrb[0].mxu0
  %v165 = vadd.f32 0.0, %v164
  %v166 = vpop.f32.mrb[0].mxu0
  %v167 = vadd.f32 0.0, %v166
  %168 = vdwg.mxu0
  %169 = vmatprep.subr.mxu0 %v33
  %170 = vmatpush1.msra.mxu0 %v32
  %171 = vmatprep.subr.mxu0 %v49
  %172 = vmatpush1.msra.mxu0 %v48
  %173 = vmatprep.subr.mxu0 %v65
  %174 = vmatpush1.msra.mxu0 %v64
  %175 = vmatprep.subr.mxu0 %v81
  %176 = vmatpush1.msra.mxu0 %v80
  %177 = vmatprep.subr.mxu0 0.0
  %178 = vmatpush1.msra.mxu0 0.0
  %179 = vmatprep.subr.mxu0 0.0
  %180 = vmatpush1.msra.mxu0 0.0
  %181 = vmatprep.subr.mxu0 0.0
  %182 = vmatpush1.msra.mxu0 0.0
  %183 = vmatprep.subr.mxu0 0.0
  %184 = vmatpush1.msra.mxu0 0.0
  %185 = vmatprep.subr.mxu0 0.0
  %186 = vmatpush1.msra.mxu0 0.0
  %187 = vmatprep.subr.mxu0 0.0
  %188 = vmatpush1.msra.mxu0 0.0
  %189 = vmatprep.subr.mxu0 0.0
  %190 = vmatpush1.msra.mxu0 0.0
  %191 = vmatprep.subr.mxu0 0.0
  %192 = vmatpush1.msra.mxu0 0.0
  %193 = vmatprep.subr.mxu0 0.0
  %194 = vmatpush1.msra.mxu0 0.0
  %195 = vmatprep.subr.mxu0 0.0
  %196 = vmatpush1.msra.mxu0 0.0
  %197 = vmatprep.subr.mxu0 0.0
  %198 = vmatpush1.msra.mxu0 0.0
  %199 = vmatprep.subr.mxu0 0.0
  %200 = vmatpush1.msra.mxu0 0.0
  %201 = vmatprep.subr.mxu0 0.0
  %202 = vmatpush1.msra.mxu0 0.0
  %203 = vmatprep.subr.mxu0 0.0
  %204 = vmatpush1.msra.mxu0 0.0
  %205 = vmatprep.subr.mxu0 0.0
  %206 = vmatpush1.msra.mxu0 0.0
  %207 = vmatprep.subr.mxu0 0.0
  %208 = vmatpush1.msra.mxu0 0.0
  %209 = vmatprep.subr.mxu0 0.0
  %210 = vmatpush1.msra.mxu0 0.0
  %211 = vmatprep.subr.mxu0 0.0
  %212 = vmatpush1.msra.mxu0 0.0
  %213 = vmatprep.subr.mxu0 0.0
  %214 = vmatpush1.msra.mxu0 0.0
  %215 = vmatprep.subr.mxu0 0.0
  %216 = vmatpush1.msra.mxu0 0.0
  %217 = vmatprep.subr.mxu0 0.0
  %218 = vmatpush1.msra.mxu0 0.0
  %219 = vmatprep.subr.mxu0 0.0
  %220 = vmatpush1.msra.mxu0 0.0
  %221 = vmatprep.subr.mxu0 0.0
  %222 = vmatpush1.msra.mxu0 0.0
  %223 = vmatprep.subr.mxu0 0.0
  %224 = vmatpush1.msra.mxu0 0.0
  %225 = vmatprep.subr.mxu0 0.0
  %226 = vmatpush1.msra.mxu0 0.0
  %227 = vmatprep.subr.mxu0 0.0
  %228 = vmatpush1.msra.mxu0 0.0
  %229 = vmatprep.subr.mxu0 0.0
  %230 = vmatpush1.msra.mxu0 0.0
  %231 = vmatprep.subr.mxu0 0.0
  %232 = vmatpush1.msra.mxu0 0.0
  %233 = vmatprep.mubr.f32.mxu0 0.0
  %234 = vmatmul.mubr.f32.gmra.mrb[0].mxu0 %v96
  %v235 = vpop.f32.mrb[0].mxu0
  %v236 = vadd.f32 0.0, %v235
  %v237 = vpop.f32.mrb[0].mxu0
  %v238 = vadd.f32 0.0, %v237
  %239 = vdwg.mxu0
  %240 = vmatprep.subr.mxu0 %v35
  %241 = vmatpush1.msra.mxu0 %v34
  %242 = vmatprep.subr.mxu0 %v51
  %243 = vmatpush1.msra.mxu0 %v50
  %244 = vmatprep.subr.mxu0 %v67
  %245 = vmatpush1.msra.mxu0 %v66
  %246 = vmatprep.subr.mxu0 %v83
  %247 = vmatpush1.msra.mxu0 %v82
  %248 = vmatprep.subr.mxu0 0.0
  %249 = vmatpush1.msra.mxu0 0.0
  %250 = vmatprep.subr.mxu0 0.0
  %251 = vmatpush1.msra.mxu0 0.0
  %252 = vmatprep.subr.mxu0 0.0
  %253 = vmatpush1.msra.mxu0 0.0
  %254 = vmatprep.subr.mxu0 0.0
  %255 = vmatpush1.msra.mxu0 0.0
  %256 = vmatprep.subr.mxu0 0.0
  %257 = vmatpush1.msra.mxu0 0.0
  %258 = vmatprep.subr.mxu0 0.0
  %259 = vmatpush1.msra.mxu0 0.0
  %260 = vmatprep.subr.mxu0 0.0
  %261 = vmatpush1.msra.mxu0 0.0
  %262 = vmatprep.subr.mxu0 0.0
  %263 = vmatpush1.msra.mxu0 0.0
  %264 = vmatprep.subr.mxu0 0.0
  %265 = vmatpush1.msra.mxu0 0.0
  %266 = vmatprep.subr.mxu0 0.0
  %267 = vmatpush1.msra.mxu0 0.0
  %268 = vmatprep.subr.mxu0 0.0
  %269 = vmatpush1.msra.mxu0 0.0
  %270 = vmatprep.subr.mxu0 0.0
  %271 = vmatpush1.msra.mxu0 0.0
  %272 = vmatprep.subr.mxu0 0.0
  %273 = vmatpush1.msra.mxu0 0.0
  %274 = vmatprep.subr.mxu0 0.0
  %275 = vmatpush1.msra.mxu0 0.0
  %276 = vmatprep.subr.mxu0 0.0
  %277 = vmatpush1.msra.mxu0 0.0
  %278 = vmatprep.subr.mxu0 0.0
  %279 = vmatpush1.msra.mxu0 0.0
  %280 = vmatprep.subr.mxu0 0.0
  %281 = vmatpush1.msra.mxu0 0.0
  %282 = vmatprep.subr.mxu0 0.0
  %283 = vmatpush1.msra.mxu0 0.0
  %284 = vmatprep.subr.mxu0 0.0
  %285 = vmatpush1.msra.mxu0 0.0
  %286 = vmatprep.subr.mxu0 0.0
  %287 = vmatpush1.msra.mxu0 0.0
  %288 = vmatprep.subr.mxu0 0.0
  %289 = vmatpush1.msra.mxu0 0.0
  %290 = vmatprep.subr.mxu0 0.0
  %291 = vmatpush1.msra.mxu0 0.0
  %292 = vmatprep.subr.mxu0 0.0
  %293 = vmatpush1.msra.mxu0 0.0
  %294 = vmatprep.subr.mxu0 0.0
  %295 = vmatpush1.msra.mxu0 0.0
  %296 = vmatprep.subr.mxu0 0.0
  %297 = vmatpush1.msra.mxu0 0.0
  %298 = vmatprep.subr.mxu0 0.0
  %299 = vmatpush1.msra.mxu0 0.0
  %300 = vmatprep.subr.mxu0 0.0
  %301 = vmatpush1.msra.mxu0 0.0
  %302 = vmatprep.subr.mxu0 0.0
  %303 = vmatpush1.msra.mxu0 0.0
  %304 = vmatprep.mubr.f32.mxu0 0.0
  %305 = vmatmul.mubr.f32.gmra.mrb[0].mxu0 %v96
  %v306 = vpop.f32.mrb[0].mxu0
  %v307 = vadd.f32 0.0, %v306
  %v308 = vpop.f32.mrb[0].mxu0
  %v309 = vadd.f32 0.0, %v308
  %310 = vdwg.mxu0
  %311 = vmatprep.subr.mxu0 %v37
  %312 = vmatpush1.msra.mxu0 %v36
  %313 = vmatprep.subr.mxu0 %v53
  %314 = vmatpush1.msra.mxu0 %v52
  %315 = vmatprep.subr.mxu0 %v69
  %316 = vmatpush1.msra.mxu0 %v68
  %317 = vmatprep.subr.mxu0 %v85
  %318 = vmatpush1.msra.mxu0 %v84
  %319 = vmatprep.subr.mxu0 0.0
  %320 = vmatpush1.msra.mxu0 0.0
  %321 = vmatprep.subr.mxu0 0.0
  %322 = vmatpush1.msra.mxu0 0.0
  %323 = vmatprep.subr.mxu0 0.0
  %324 = vmatpush1.msra.mxu0 0.0
  %325 = vmatprep.subr.mxu0 0.0
  %326 = vmatpush1.msra.mxu0 0.0
  %327 = vmatprep.subr.mxu0 0.0
  %328 = vmatpush1.msra.mxu0 0.0
  %329 = vmatprep.subr.mxu0 0.0
  %330 = vmatpush1.msra.mxu0 0.0
  %331 = vmatprep.subr.mxu0 0.0
  %332 = vmatpush1.msra.mxu0 0.0
  %333 = vmatprep.subr.mxu0 0.0
  %334 = vmatpush1.msra.mxu0 0.0
  %335 = vmatprep.subr.mxu0 0.0
  %336 = vmatpush1.msra.mxu0 0.0
  %337 = vmatprep.subr.mxu0 0.0
  %338 = vmatpush1.msra.mxu0 0.0
  %339 = vmatprep.subr.mxu0 0.0
  %340 = vmatpush1.msra.mxu0 0.0
  %341 = vmatprep.subr.mxu0 0.0
  %342 = vmatpush1.msra.mxu0 0.0
  %343 = vmatprep.subr.mxu0 0.0
  %344 = vmatpush1.msra.mxu0 0.0
  %345 = vmatprep.subr.mxu0 0.0
  %346 = vmatpush1.msra.mxu0 0.0
  %347 = vmatprep.subr.mxu0 0.0
  %348 = vmatpush1.msra.mxu0 0.0
  %349 = vmatprep.subr.mxu0 0.0
  %350 = vmatpush1.msra.mxu0 0.0
  %351 = vmatprep.subr.mxu0 0.0
  %352 = vmatpush1.msra.mxu0 0.0
  %353 = vmatprep.subr.mxu0 0.0
  %354 = vmatpush1.msra.mxu0 0.0
  %355 = vmatprep.subr.mxu0 0.0
  %356 = vmatpush1.msra.mxu0 0.0
  %357 = vmatprep.subr.mxu0 0.0
  %358 = vmatpush1.msra.mxu0 0.0
  %359 = vmatprep.subr.mxu0 0.0
  %360 = vmatpush1.msra.mxu0 0.0
  %361 = vmatprep.subr.mxu0 0.0
  %362 = vmatpush1.msra.mxu0 0.0
  %363 = vmatprep.subr.mxu0 0.0
  %364 = vmatpush1.msra.mxu0 0.0
  %365 = vmatprep.subr.mxu0 0.0
  %366 = vmatpush1.msra.mxu0 0.0
  %367 = vmatprep.subr.mxu0 0.0
  %368 = vmatpush1.msra.mxu0 0.0
  %369 = vmatprep.subr.mxu0 0.0
  %370 = vmatpush1.msra.mxu0 0.0
  %371 = vmatprep.subr.mxu0 0.0
  %372 = vmatpush1.msra.mxu0 0.0
  %373 = vmatprep.subr.mxu0 0.0
  %374 = vmatpush1.msra.mxu0 0.0
  %375 = vmatprep.mubr.f32.mxu0 0.0
  %376 = vmatmul.mubr.f32.gmra.mrb[0].mxu0 %v96
  %v377 = vpop.f32.mrb[0].mxu0
  %v378 = vadd.f32 0.0, %v377
  %v379 = vpop.f32.mrb[0].mxu0
  %v380 = vadd.f32 0.0, %v379
  %381 = vdwg.mxu0
  %382 = vmatprep.subr.mxu0 %v39
  %383 = vmatpush1.msra.mxu0 %v38
  %384 = vmatprep.subr.mxu0 %v55
  %385 = vmatpush1.msra.mxu0 %v54
  %386 = vmatprep.subr.mxu0 %v71
  %387 = vmatpush1.msra.mxu0 %v70
  %388 = vmatprep.subr.mxu0 %v87
  %389 = vmatpush1.msra.mxu0 %v86
  %390 = vmatprep.subr.mxu0 0.0
  %391 = vmatpush1.msra.mxu0 0.0
  %392 = vmatprep.subr.mxu0 0.0
  %393 = vmatpush1.msra.mxu0 0.0
  %394 = vmatprep.subr.mxu0 0.0
  %395 = vmatpush1.msra.mxu0 0.0
  %396 = vmatprep.subr.mxu0 0.0
  %397 = vmatpush1.msra.mxu0 0.0
  %398 = vmatprep.subr.mxu0 0.0
  %399 = vmatpush1.msra.mxu0 0.0
  %400 = vmatprep.subr.mxu0 0.0
  %401 = vmatpush1.msra.mxu0 0.0
  %402 = vmatprep.subr.mxu0 0.0
  %403 = vmatpush1.msra.mxu0 0.0
  %404 = vmatprep.subr.mxu0 0.0
  %405 = vmatpush1.msra.mxu0 0.0
  %406 = vmatprep.subr.mxu0 0.0
  %407 = vmatpush1.msra.mxu0 0.0
  %408 = vmatprep.subr.mxu0 0.0
  %409 = vmatpush1.msra.mxu0 0.0
  %410 = vmatprep.subr.mxu0 0.0
  %411 = vmatpush1.msra.mxu0 0.0
  %412 = vmatprep.subr.mxu0 0.0
  %413 = vmatpush1.msra.mxu0 0.0
  %414 = vmatprep.subr.mxu0 0.0
  %415 = vmatpush1.msra.mxu0 0.0
  %416 = vmatprep.subr.mxu0 0.0
  %417 = vmatpush1.msra.mxu0 0.0
  %418 = vmatprep.subr.mxu0 0.0
  %419 = vmatpush1.msra.mxu0 0.0
  %420 = vmatprep.subr.mxu0 0.0
  %421 = vmatpush1.msra.mxu0 0.0
  %422 = vmatprep.subr.mxu0 0.0
  %423 = vmatpush1.msra.mxu0 0.0
  %424 = vmatprep.subr.mxu0 0.0
  %425 = vmatpush1.msra.mxu0 0.0
  %426 = vmatprep.subr.mxu0 0.0
  %427 = vmatpush1.msra.mxu0 0.0
  %428 = vmatprep.subr.mxu0 0.0
  %429 = vmatpush1.msra.mxu0 0.0
  %430 = vmatprep.subr.mxu0 0.0
  %431 = vmatpush1.msra.mxu0 0.0
  %432 = vmatprep.subr.mxu0 0.0
  %433 = vmatpush1.msra.mxu0 0.0
  %434 = vmatprep.subr.mxu0 0.0
  %435 = vmatpush1.msra.mxu0 0.0
  %436 = vmatprep.subr.mxu0 0.0
  %437 = vmatpush1.msra.mxu0 0.0
  %438 = vmatprep.subr.mxu0 0.0
  %439 = vmatpush1.msra.mxu0 0.0
  %440 = vmatprep.subr.mxu0 0.0
  %441 = vmatpush1.msra.mxu0 0.0
  %442 = vmatprep.subr.mxu0 0.0
  %443 = vmatpush1.msra.mxu0 0.0
  %444 = vmatprep.subr.mxu0 0.0
  %445 = vmatpush1.msra.mxu0 0.0
  %446 = vmatprep.mubr.f32.mxu0 0.0
  %447 = vmatmul.mubr.f32.gmra.mrb[0].mxu0 %v96
  %v448 = vpop.f32.mrb[0].mxu0
  %v449 = vadd.f32 0.0, %v448
  %v450 = vpop.f32.mrb[0].mxu0
  %v451 = vadd.f32 0.0, %v450
  %452 = vdwg.mxu0
  %453 = vmatprep.subr.mxu0 %v41
  %454 = vmatpush1.msra.mxu0 %v40
  %455 = vmatprep.subr.mxu0 %v57
  %456 = vmatpush1.msra.mxu0 %v56
  %457 = vmatprep.subr.mxu0 %v73
  %458 = vmatpush1.msra.mxu0 %v72
  %459 = vmatprep.subr.mxu0 %v89
  %460 = vmatpush1.msra.mxu0 %v88
  %461 = vmatprep.subr.mxu0 0.0
  %462 = vmatpush1.msra.mxu0 0.0
  %463 = vmatprep.subr.mxu0 0.0
  %464 = vmatpush1.msra.mxu0 0.0
  %465 = vmatprep.subr.mxu0 0.0
  %466 = vmatpush1.msra.mxu0 0.0
  %467 = vmatprep.subr.mxu0 0.0
  %468 = vmatpush1.msra.mxu0 0.0
  %469 = vmatprep.subr.mxu0 0.0
  %470 = vmatpush1.msra.mxu0 0.0
  %471 = vmatprep.subr.mxu0 0.0
  %472 = vmatpush1.msra.mxu0 0.0
  %473 = vmatprep.subr.mxu0 0.0
  %474 = vmatpush1.msra.mxu0 0.0
  %475 = vmatprep.subr.mxu0 0.0
  %476 = vmatpush1.msra.mxu0 0.0
  %477 = vmatprep.subr.mxu0 0.0
  %478 = vmatpush1.msra.mxu0 0.0
  %479 = vmatprep.subr.mxu0 0.0
  %480 = vmatpush1.msra.mxu0 0.0
  %481 = vmatprep.subr.mxu0 0.0
  %482 = vmatpush1.msra.mxu0 0.0
  %483 = vmatprep.subr.mxu0 0.0
  %484 = vmatpush1.msra.mxu0 0.0
  %485 = vmatprep.subr.mxu0 0.0
  %486 = vmatpush1.msra.mxu0 0.0
  %487 = vmatprep.subr.mxu0 0.0
  %488 = vmatpush1.msra.mxu0 0.0
  %489 = vmatprep.subr.mxu0 0.0
  %490 = vmatpush1.msra.mxu0 0.0
  %491 = vmatprep.subr.mxu0 0.0
  %492 = vmatpush1.msra.mxu0 0.0
  %493 = vmatprep.subr.mxu0 0.0
  %494 = vmatpush1.msra.mxu0 0.0
  %495 = vmatprep.subr.mxu0 0.0
  %496 = vmatpush1.msra.mxu0 0.0
  %497 = vmatprep.subr.mxu0 0.0
  %498 = vmatpush1.msra.mxu0 0.0
  %499 = vmatprep.subr.mxu0 0.0
  %500 = vmatpush1.msra.mxu0 0.0
  %501 = vmatprep.subr.mxu0 0.0
  %502 = vmatpush1.msra.mxu0 0.0
  %503 = vmatprep.subr.mxu0 0.0
  %504 = vmatpush1.msra.mxu0 0.0
  %505 = vmatprep.subr.mxu0 0.0
  %506 = vmatpush1.msra.mxu0 0.0
  %507 = vmatprep.subr.mxu0 0.0
  %508 = vmatpush1.msra.mxu0 0.0
  %509 = vmatprep.subr.mxu0 0.0
  %510 = vmatpush1.msra.mxu0 0.0
  %511 = vmatprep.subr.mxu0 0.0
  %512 = vmatpush1.msra.mxu0 0.0
  %513 = vmatprep.subr.mxu0 0.0
  %514 = vmatpush1.msra.mxu0 0.0
  %515 = vmatprep.subr.mxu0 0.0
  %516 = vmatpush1.msra.mxu0 0.0
  %517 = vmatprep.mubr.f32.mxu0 0.0
  %518 = vmatmul.mubr.f32.gmra.mrb[0].mxu0 %v96
  %v519 = vpop.f32.mrb[0].mxu0
  %v520 = vadd.f32 0.0, %v519
  %v521 = vpop.f32.mrb[0].mxu0
  %v522 = vadd.f32 0.0, %v521
  %523 = vdwg.mxu0
  %524 = vmatprep.subr.mxu0 %v43
  %525 = vmatpush1.msra.mxu0 %v42
  %526 = vmatprep.subr.mxu0 %v59
  %527 = vmatpush1.msra.mxu0 %v58
  %528 = vmatprep.subr.mxu0 %v75
  %529 = vmatpush1.msra.mxu0 %v74
  %530 = vmatprep.subr.mxu0 %v91
  %531 = vmatpush1.msra.mxu0 %v90
  %532 = vmatprep.subr.mxu0 0.0
  %533 = vmatpush1.msra.mxu0 0.0
  %534 = vmatprep.subr.mxu0 0.0
  %535 = vmatpush1.msra.mxu0 0.0
  %536 = vmatprep.subr.mxu0 0.0
  %537 = vmatpush1.msra.mxu0 0.0
  %538 = vmatprep.subr.mxu0 0.0
  %539 = vmatpush1.msra.mxu0 0.0
  %540 = vmatprep.subr.mxu0 0.0
  %541 = vmatpush1.msra.mxu0 0.0
  %542 = vmatprep.subr.mxu0 0.0
  %543 = vmatpush1.msra.mxu0 0.0
  %544 = vmatprep.subr.mxu0 0.0
  %545 = vmatpush1.msra.mxu0 0.0
  %546 = vmatprep.subr.mxu0 0.0
  %547 = vmatpush1.msra.mxu0 0.0
  %548 = vmatprep.subr.mxu0 0.0
  %549 = vmatpush1.msra.mxu0 0.0
  %550 = vmatprep.subr.mxu0 0.0
  %551 = vmatpush1.msra.mxu0 0.0
  %552 = vmatprep.subr.mxu0 0.0
  %553 = vmatpush1.msra.mxu0 0.0
  %554 = vmatprep.subr.mxu0 0.0
  %555 = vmatpush1.msra.mxu0 0.0
  %556 = vmatprep.subr.mxu0 0.0
  %557 = vmatpush1.msra.mxu0 0.0
  %558 = vmatprep.subr.mxu0 0.0
  %559 = vmatpush1.msra.mxu0 0.0
  %560 = vmatprep.subr.mxu0 0.0
  %561 = vmatpush1.msra.mxu0 0.0
  %562 = vmatprep.subr.mxu0 0.0
  %563 = vmatpush1.msra.mxu0 0.0
  %564 = vmatprep.subr.mxu0 0.0
  %565 = vmatpush1.msra.mxu0 0.0
  %566 = vmatprep.subr.mxu0 0.0
  %567 = vmatpush1.msra.mxu0 0.0
  %568 = vmatprep.subr.mxu0 0.0
  %569 = vmatpush1.msra.mxu0 0.0
  %570 = vmatprep.subr.mxu0 0.0
  %571 = vmatpush1.msra.mxu0 0.0
  %572 = vmatprep.subr.mxu0 0.0
  %573 = vmatpush1.msra.mxu0 0.0
  %574 = vmatprep.subr.mxu0 0.0
  %575 = vmatpush1.msra.mxu0 0.0
  %576 = vmatprep.subr.mxu0 0.0
  %577 = vmatpush1.msra.mxu0 0.0
  %578 = vmatprep.subr.mxu0 0.0
  %579 = vmatpush1.msra.mxu0 0.0
  %580 = vmatprep.subr.mxu0 0.0
  %581 = vmatpush1.msra.mxu0 0.0
  %582 = vmatprep.subr.mxu0 0.0
  %583 = vmatpush1.msra.mxu0 0.0
  %584 = vmatprep.subr.mxu0 0.0
  %585 = vmatpush1.msra.mxu0 0.0
  %586 = vmatprep.subr.mxu0 0.0
  %587 = vmatpush1.msra.mxu0 0.0
  %588 = vmatprep.mubr.f32.mxu0 0.0
  %589 = vmatmul.mubr.f32.gmra.mrb[0].mxu0 %v96
  %v590 = vpop.f32.mrb[0].mxu0
  %v591 = vadd.f32 0.0, %v590
  %v592 = vpop.f32.mrb[0].mxu0
  %v593 = vadd.f32 0.0, %v592
  %594 = vdwg.mxu0
  %595 = vmatprep.subr.mxu0 %v45
  %596 = vmatpush1.msra.mxu0 %v44
  %597 = vmatprep.subr.mxu0 %v61
  %598 = vmatpush1.msra.mxu0 %v60
  %599 = vmatprep.subr.mxu0 %v77
  %600 = vmatpush1.msra.mxu0 %v76
  %601 = vmatprep.subr.mxu0 %v93
  %602 = vmatpush1.msra.mxu0 %v92
  %603 = vmatprep.subr.mxu0 0.0
  %604 = vmatpush1.msra.mxu0 0.0
  %605 = vmatprep.subr.mxu0 0.0
  %606 = vmatpush1.msra.mxu0 0.0
  %607 = vmatprep.subr.mxu0 0.0
  %608 = vmatpush1.msra.mxu0 0.0
  %609 = vmatprep.subr.mxu0 0.0
  %610 = vmatpush1.msra.mxu0 0.0
  %611 = vmatprep.subr.mxu0 0.0
  %612 = vmatpush1.msra.mxu0 0.0
  %613 = vmatprep.subr.mxu0 0.0
  %614 = vmatpush1.msra.mxu0 0.0
  %615 = vmatprep.subr.mxu0 0.0
  %616 = vmatpush1.msra.mxu0 0.0
  %617 = vmatprep.subr.mxu0 0.0
  %618 = vmatpush1.msra.mxu0 0.0
  %619 = vmatprep.subr.mxu0 0.0
  %620 = vmatpush1.msra.mxu0 0.0
  %621 = vmatprep.subr.mxu0 0.0
  %622 = vmatpush1.msra.mxu0 0.0
  %623 = vmatprep.subr.mxu0 0.0
  %624 = vmatpush1.msra.mxu0 0.0
  %625 = vmatprep.subr.mxu0 0.0
  %626 = vmatpush1.msra.mxu0 0.0
  %627 = vmatprep.subr.mxu0 0.0
  %628 = vmatpush1.msra.mxu0 0.0
  %629 = vmatprep.subr.mxu0 0.0
  %630 = vmatpush1.msra.mxu0 0.0
  %631 = vmatprep.subr.mxu0 0.0
  %632 = vmatpush1.msra.mxu0 0.0
  %633 = vmatprep.subr.mxu0 0.0
  %634 = vmatpush1.msra.mxu0 0.0
  %635 = vmatprep.subr.mxu0 0.0
  %636 = vmatpush1.msra.mxu0 0.0
  %637 = vmatprep.subr.mxu0 0.0
  %638 = vmatpush1.msra.mxu0 0.0
  %639 = vmatprep.subr.mxu0 0.0
  %640 = vmatpush1.msra.mxu0 0.0
  %641 = vmatprep.subr.mxu0 0.0
  %642 = vmatpush1.msra.mxu0 0.0
  %643 = vmatprep.subr.mxu0 0.0
  %644 = vmatpush1.msra.mxu0 0.0
  %645 = vmatprep.subr.mxu0 0.0
  %646 = vmatpush1.msra.mxu0 0.0
  %647 = vmatprep.subr.mxu0 0.0
  %648 = vmatpush1.msra.mxu0 0.0
  %649 = vmatprep.subr.mxu0 0.0
  %650 = vmatpush1.msra.mxu0 0.0
  %651 = vmatprep.subr.mxu0 0.0
  %652 = vmatpush1.msra.mxu0 0.0
  %653 = vmatprep.subr.mxu0 0.0
  %654 = vmatpush1.msra.mxu0 0.0
  %655 = vmatprep.subr.mxu0 0.0
  %656 = vmatpush1.msra.mxu0 0.0
  %657 = vmatprep.subr.mxu0 0.0
  %658 = vmatpush1.msra.mxu0 0.0
  %659 = vmatprep.mubr.f32.mxu0 0.0
  %660 = vmatmul.mubr.f32.gmra.mrb[0].mxu0 %v96
  %v661 = vpop.f32.mrb[0].mxu0
  %v662 = vadd.f32 0.0, %v661
  %v663 = vpop.f32.mrb[0].mxu0
  %v664 = vadd.f32 0.0, %v663
  %665 = vdwg.mxu0
  %v666 = vxor.u32 %v165, 2147483648
  %v667 = vxor.u32 %v167, 2147483648
  %v668 = vxor.u32 %v236, 2147483648
  %v669 = vxor.u32 %v238, 2147483648
  %v670 = vxor.u32 %v307, 2147483648
  %v671 = vxor.u32 %v309, 2147483648
  %v672 = vxor.u32 %v378, 2147483648
  %v673 = vxor.u32 %v380, 2147483648
  %v674 = vxor.u32 %v449, 2147483648
  %v675 = vxor.u32 %v451, 2147483648
  %v676 = vxor.u32 %v520, 2147483648
  %v677 = vxor.u32 %v522, 2147483648
  %v678 = vxor.u32 %v591, 2147483648
  %v679 = vxor.u32 %v593, 2147483648
  %v680 = vxor.u32 %v662, 2147483648
  %v681 = vxor.u32 %v664, 2147483648
  %v682 = vmul.f32 %v666, 1.442695
  %v683 = vpow.pop %v682
  %v684 = vmul.f32 %v667, 1.442695
  %v685 = vpow.pop %v684
  %v686 = vmul.f32 %v668, 1.442695
  %v687 = vpow.pop %v686
  %v688 = vmul.f32 %v669, 1.442695
  %v689 = vpow.pop %v688
  %v690 = vmul.f32 %v670, 1.442695
  %v691 = vpow.pop %v690
  %v692 = vmul.f32 %v671, 1.442695
  %v693 = vpow.pop %v692
  %v694 = vmul.f32 %v672, 1.442695
  %v695 = vpow.pop %v694
  %v696 = vmul.f32 %v673, 1.442695
  %v697 = vpow.pop %v696
  %v698 = vmul.f32 %v674, 1.442695
  %v699 = vpow.pop %v698
  %v700 = vmul.f32 %v675, 1.442695
  %v701 = vpow.pop %v700
  %v702 = vmul.f32 %v676, 1.442695
  %v703 = vpow.pop %v702
  %v704 = vmul.f32 %v677, 1.442695
  %v705 = vpow.pop %v704
  %v706 = vmul.f32 %v678, 1.442695
  %v707 = vpow.pop %v706
  %v708 = vmul.f32 %v679, 1.442695
  %v709 = vpow.pop %v708
  %v710 = vmul.f32 %v680, 1.442695
  %v711 = vpow.pop %v710
  %v712 = vmul.f32 %v681, 1.442695
  %v713 = vpow.pop %v712
  %v714 = vadd.f32 %v683, 1.0
  %v715 = vadd.f32 %v685, 1.0
  %v716 = vadd.f32 %v687, 1.0
  %v717 = vadd.f32 %v689, 1.0
  %v718 = vadd.f32 %v691, 1.0
  %v719 = vadd.f32 %v693, 1.0
  %v720 = vadd.f32 %v695, 1.0
  %v721 = vadd.f32 %v697, 1.0
  %v722 = vadd.f32 %v699, 1.0
  %v723 = vadd.f32 %v701, 1.0
  %v724 = vadd.f32 %v703, 1.0
  %v725 = vadd.f32 %v705, 1.0
  %v726 = vadd.f32 %v707, 1.0
  %v727 = vadd.f32 %v709, 1.0
  %v728 = vadd.f32 %v711, 1.0
  %v729 = vadd.f32 %v713, 1.0
  %v730 = vrcp.pop %v714
  %v731 = vmul.f32 1.0, %v730
  %v732 = vrcp.pop %v715
  %v733 = vmul.f32 1.0, %v732
  %v734 = vrcp.pop %v716
  %v735 = vmul.f32 1.0, %v734
  %v736 = vrcp.pop %v717
  %v737 = vmul.f32 1.0, %v736
  %v738 = vrcp.pop %v718
  %v739 = vmul.f32 1.0, %v738
  %v740 = vrcp.pop %v719
  %v741 = vmul.f32 1.0, %v740
  %v742 = vrcp.pop %v720
  %v743 = vmul.f32 1.0, %v742
  %v744 = vrcp.pop %v721
  %v745 = vmul.f32 1.0, %v744
  %v746 = vrcp.pop %v722
  %v747 = vmul.f32 1.0, %v746
  %v748 = vrcp.pop %v723
  %v749 = vmul.f32 1.0, %v748
  %v750 = vrcp.pop %v724
  %v751 = vmul.f32 1.0, %v750
  %v752 = vrcp.pop %v725
  %v753 = vmul.f32 1.0, %v752
  %v754 = vrcp.pop %v726
  %v755 = vmul.f32 1.0, %v754
  %v756 = vrcp.pop %v727
  %v757 = vmul.f32 1.0, %v756
  %v758 = vrcp.pop %v728
  %v759 = vmul.f32 1.0, %v758
  %v760 = vrcp.pop %v729
  %v761 = vmul.f32 1.0, %v760
  %v762 = vmul.f32 %v165, %v731
  %v763 = vmul.f32 %v167, %v733
  %v764 = vmul.f32 %v236, %v735
  %v765 = vmul.f32 %v238, %v737
  %v766 = vmul.f32 %v307, %v739
  %v767 = vmul.f32 %v309, %v741
  %v768 = vmul.f32 %v378, %v743
  %v769 = vmul.f32 %v380, %v745
  %v770 = vmul.f32 %v449, %v747
  %v771 = vmul.f32 %v451, %v749
  %v772 = vmul.f32 %v520, %v751
  %v773 = vmul.f32 %v522, %v753
  %v774 = vmul.f32 %v591, %v755
  %v775 = vmul.f32 %v593, %v757
  %v776 = vmul.f32 %v662, %v759
  %v777 = vmul.f32 %v664, %v761
  %v778 = vld [vmem:[%s2] sm:$0xff]
  %v779 = vld [vmem:[%s2 + $0x8] sm:$0xff]
  %v780 = vld [vmem:[%s2 + $0x10] sm:$0xff]
  %v781 = vld [vmem:[%s2 + $0x18] sm:$0xff]
  %v782 = vld [vmem:[%s2 + $0x20] sm:$0xff]
  %v783 = vld [vmem:[%s2 + $0x28] sm:$0xff]
  %v784 = vld [vmem:[%s2 + $0x30] sm:$0xff]
  %v785 = vld [vmem:[%s2 + $0x38] sm:$0xff]
  %v786 = vld [vmem:[%s2 + $0x40] sm:$0xff]
  %v787 = vld [vmem:[%s2 + $0x48] sm:$0xff]
  %v788 = vld [vmem:[%s2 + $0x50] sm:$0xff]
  %v789 = vld [vmem:[%s2 + $0x58] sm:$0xff]
  %v790 = vld [vmem:[%s2 + $0x60] sm:$0xff]
  %v791 = vld [vmem:[%s2 + $0x68] sm:$0xff]
  %v792 = vld [vmem:[%s2 + $0x70] sm:$0xff]
  %v793 = vld [vmem:[%s2 + $0x78] sm:$0xff]
  %v794 = vld [vmem:[%s2 + $0x80] sm:$0xff]
  %v795 = vld [vmem:[%s2 + $0x88] sm:$0xff]
  %v796 = vld [vmem:[%s2 + $0x90] sm:$0xff]
  %v797 = vld [vmem:[%s2 + $0x98] sm:$0xff]
  %v798 = vld [vmem:[%s2 + $0xa0] sm:$0xff]
  %v799 = vld [vmem:[%s2 + $0xa8] sm:$0xff]
  %v800 = vld [vmem:[%s2 + $0xb0] sm:$0xff]
  %v801 = vld [vmem:[%s2 + $0xb8] sm:$0xff]
  %v802 = vld [vmem:[%s2 + $0xc0] sm:$0xff]
  %v803 = vld [vmem:[%s2 + $0xc8] sm:$0xff]
  %v804 = vld [vmem:[%s2 + $0xd0] sm:$0xff]
  %v805 = vld [vmem:[%s2 + $0xd8] sm:$0xff]
  %v806 = vld [vmem:[%s2 + $0xe0] sm:$0xff]
  %v807 = vld [vmem:[%s2 + $0xe8] sm:$0xff]
  %v808 = vld [vmem:[%s2 + $0xf0] sm:$0xff]
  %v809 = vld [vmem:[%s2 + $0xf8] sm:$0xff]
  %v810 = vld [vmem:[%s3] sm:$0xff]
  %811 = vmatprep.subr.mxu0 0.0
  %812 = vmatpush1.msra.mxu0 %v778
  %813 = vmatprep.subr.mxu0 0.0
  %814 = vmatpush1.msra.mxu0 %v779
  %815 = vmatprep.subr.mxu0 0.0
  %816 = vmatpush1.msra.mxu0 %v780
  %817 = vmatprep.subr.mxu0 0.0
  %818 = vmatpush1.msra.mxu0 %v781
  %819 = vmatprep.subr.mxu0 0.0
  %820 = vmatpush1.msra.mxu0 %v782
  %821 = vmatprep.subr.mxu0 0.0
  %822 = vmatpush1.msra.mxu0 %v783
  %823 = vmatprep.subr.mxu0 0.0
  %824 = vmatpush1.msra.mxu0 %v784
  %825 = vmatprep.subr.mxu0 0.0
  %826 = vmatpush1.msra.mxu0 %v785
  %827 = vmatprep.subr.mxu0 0.0
  %828 = vmatpush1.msra.mxu0 %v786
  %829 = vmatprep.subr.mxu0 0.0
  %830 = vmatpush1.msra.mxu0 %v787
  %831 = vmatprep.subr.mxu0 0.0
  %832 = vmatpush1.msra.mxu0 %v788
  %833 = vmatprep.subr.mxu0 0.0
  %834 = vmatpush1.msra.mxu0 %v789
  %835 = vmatprep.subr.mxu0 0.0
  %836 = vmatpush1.msra.mxu0 %v790
  %837 = vmatprep.subr.mxu0 0.0
  %838 = vmatpush1.msra.mxu0 %v791
  %839 = vmatprep.subr.mxu0 0.0
  %840 = vmatpush1.msra.mxu0 %v792
  %841 = vmatprep.subr.mxu0 0.0
  %842 = vmatpush1.msra.mxu0 %v793
  %843 = vmatprep.subr.mxu0 0.0
  %844 = vmatpush1.msra.mxu0 %v794
  %845 = vmatprep.subr.mxu0 0.0
  %846 = vmatpush1.msra.mxu0 %v795
  %847 = vmatprep.subr.mxu0 0.0
  %848 = vmatpush1.msra.mxu0 %v796
  %849 = vmatprep.subr.mxu0 0.0
  %850 = vmatpush1.msra.mxu0 %v797
  %851 = vmatprep.subr.mxu0 0.0
  %852 = vmatpush1.msra.mxu0 %v798
  %853 = vmatprep.subr.mxu0 0.0
  %854 = vmatpush1.msra.mxu0 %v799
  %855 = vmatprep.subr.mxu0 0.0
  %856 = vmatpush1.msra.mxu0 %v800
  %857 = vmatprep.subr.mxu0 0.0
  %858 = vmatpush1.msra.mxu0 %v801
  %859 = vmatprep.subr.mxu0 0.0
  %860 = vmatpush1.msra.mxu0 %v802
  %861 = vmatprep.subr.mxu0 0.0
  %862 = vmatpush1.msra.mxu0 %v803
  %863 = vmatprep.subr.mxu0 0.0
  %864 = vmatpush1.msra.mxu0 %v804
  %865 = vmatprep.subr.mxu0 0.0
  %866 = vmatpush1.msra.mxu0 %v805
  %867 = vmatprep.subr.mxu0 0.0
  %868 = vmatpush1.msra.mxu0 %v806
  %869 = vmatprep.subr.mxu0 0.0
  %870 = vmatpush1.msra.mxu0 %v807
  %871 = vmatprep.subr.mxu0 0.0
  %872 = vmatpush1.msra.mxu0 %v808
  %873 = vmatprep.subr.mxu0 0.0
  %874 = vmatpush1.msra.mxu0 %v809
  %875 = vmatprep.mubr.f32.mxu0 %v763
  %876 = vmatmul.mubr.f32.gmra.mrb[0].mxu0 %v762
  %v877 = vpop.f32.mrb[0].mxu0
  %v878 = vadd.f32 0.0, %v877
  %v879 = vpop.f32.mrb[0].mxu0
  %880 = vdwg.mxu0
  %v881 = vmul.f32 %v878, %v810
  %v882 = vrot.slane %v881, 4
  %v883 = vadd.f32 %v881, %v882
  %v884 = vrot.slane %v883, 2
  %v885 = vadd.f32 %v883, %v884
  %v886 = vrot.slane %v885, 1
  %v887 = vadd.f32 %v885, %v886
  %888 = vmatprep.subr.mxu0 0.0
  %889 = vmatpush1.msra.mxu0 %v778
  %890 = vmatprep.subr.mxu0 0.0
  %891 = vmatpush1.msra.mxu0 %v779
  %892 = vmatprep.subr.mxu0 0.0
  %893 = vmatpush1.msra.mxu0 %v780
  %894 = vmatprep.subr.mxu0 0.0
  %895 = vmatpush1.msra.mxu0 %v781
  %896 = vmatprep.subr.mxu0 0.0
  %897 = vmatpush1.msra.mxu0 %v782
  %898 = vmatprep.subr.mxu0 0.0
  %899 = vmatpush1.msra.mxu0 %v783
  %900 = vmatprep.subr.mxu0 0.0
  %901 = vmatpush1.msra.mxu0 %v784
  %902 = vmatprep.subr.mxu0 0.0
  %903 = vmatpush1.msra.mxu0 %v785
  %904 = vmatprep.subr.mxu0 0.0
  %905 = vmatpush1.msra.mxu0 %v786
  %906 = vmatprep.subr.mxu0 0.0
  %907 = vmatpush1.msra.mxu0 %v787
  %908 = vmatprep.subr.mxu0 0.0
  %909 = vmatpush1.msra.mxu0 %v788
  %910 = vmatprep.subr.mxu0 0.0
  %911 = vmatpush1.msra.mxu0 %v789
  %912 = vmatprep.subr.mxu0 0.0
  %913 = vmatpush1.msra.mxu0 %v790
  %914 = vmatprep.subr.mxu0 0.0
  %915 = vmatpush1.msra.mxu0 %v791
  %916 = vmatprep.subr.mxu0 0.0
  %917 = vmatpush1.msra.mxu0 %v792
  %918 = vmatprep.subr.mxu0 0.0
  %919 = vmatpush1.msra.mxu0 %v793
  %920 = vmatprep.subr.mxu0 0.0
  %921 = vmatpush1.msra.mxu0 %v794
  %922 = vmatprep.subr.mxu0 0.0
  %923 = vmatpush1.msra.mxu0 %v795
  %924 = vmatprep.subr.mxu0 0.0
  %925 = vmatpush1.msra.mxu0 %v796
  %926 = vmatprep.subr.mxu0 0.0
  %927 = vmatpush1.msra.mxu0 %v797
  %928 = vmatprep.subr.mxu0 0.0
  %929 = vmatpush1.msra.mxu0 %v798
  %930 = vmatprep.subr.mxu0 0.0
  %931 = vmatpush1.msra.mxu0 %v799
  %932 = vmatprep.subr.mxu0 0.0
  %933 = vmatpush1.msra.mxu0 %v800
  %934 = vmatprep.subr.mxu0 0.0
  %935 = vmatpush1.msra.mxu0 %v801
  %936 = vmatprep.subr.mxu0 0.0
  %937 = vmatpush1.msra.mxu0 %v802
  %938 = vmatprep.subr.mxu0 0.0
  %939 = vmatpush1.msra.mxu0 %v803
  %940 = vmatprep.subr.mxu0 0.0
  %941 = vmatpush1.msra.mxu0 %v804
  %942 = vmatprep.subr.mxu0 0.0
  %943 = vmatpush1.msra.mxu0 %v805
  %944 = vmatprep.subr.mxu0 0.0
  %945 = vmatpush1.msra.mxu0 %v806
  %946 = vmatprep.subr.mxu0 0.0
  %947 = vmatpush1.msra.mxu0 %v807
  %948 = vmatprep.subr.mxu0 0.0
  %949 = vmatpush1.msra.mxu0 %v808
  %950 = vmatprep.subr.mxu0 0.0
  %951 = vmatpush1.msra.mxu0 %v809
  %952 = vmatprep.mubr.f32.mxu0 %v765
  %953 = vmatmul.mubr.f32.gmra.mrb[0].mxu0 %v764
  %v954 = vpop.f32.mrb[0].mxu0
  %v955 = vadd.f32 0.0, %v954
  %v956 = vpop.f32.mrb[0].mxu0
  %957 = vdwg.mxu0
  %v958 = vmul.f32 %v955, %v810
  %v959 = vrot.slane %v958, 4
  %v960 = vadd.f32 %v958, %v959
  %v961 = vrot.slane %v960, 2
  %v962 = vadd.f32 %v960, %v961
  %v963 = vrot.slane %v962, 1
  %v964 = vadd.f32 %v962, %v963
  %965 = vmatprep.subr.mxu0 0.0
  %966 = vmatpush1.msra.mxu0 %v778
  %967 = vmatprep.subr.mxu0 0.0
  %968 = vmatpush1.msra.mxu0 %v779
  %969 = vmatprep.subr.mxu0 0.0
  %970 = vmatpush1.msra.mxu0 %v780
  %971 = vmatprep.subr.mxu0 0.0
  %972 = vmatpush1.msra.mxu0 %v781
  %973 = vmatprep.subr.mxu0 0.0
  %974 = vmatpush1.msra.mxu0 %v782
  %975 = vmatprep.subr.mxu0 0.0
  %976 = vmatpush1.msra.mxu0 %v783
  %977 = vmatprep.subr.mxu0 0.0
  %978 = vmatpush1.msra.mxu0 %v784
  %979 = vmatprep.subr.mxu0 0.0
  %980 = vmatpush1.msra.mxu0 %v785
  %981 = vmatprep.subr.mxu0 0.0
  %982 = vmatpush1.msra.mxu0 %v786
  %983 = vmatprep.subr.mxu0 0.0
  %984 = vmatpush1.msra.mxu0 %v787
  %985 = vmatprep.subr.mxu0 0.0
  %986 = vmatpush1.msra.mxu0 %v788
  %987 = vmatprep.subr.mxu0 0.0
  %988 = vmatpush1.msra.mxu0 %v789
  %989 = vmatprep.subr.mxu0 0.0
  %990 = vmatpush1.msra.mxu0 %v790
  %991 = vmatprep.subr.mxu0 0.0
  %992 = vmatpush1.msra.mxu0 %v791
  %993 = vmatprep.subr.mxu0 0.0
  %994 = vmatpush1.msra.mxu0 %v792
  %995 = vmatprep.subr.mxu0 0.0
  %996 = vmatpush1.msra.mxu0 %v793
  %997 = vmatprep.subr.mxu0 0.0
  %998 = vmatpush1.msra.mxu0 %v794
  %999 = vmatprep.subr.mxu0 0.0
  %1000 = vmatpush1.msra.mxu0 %v795
  %1001 = vmatprep.subr.mxu0 0.0
  %1002 = vmatpush1.msra.mxu0 %v796
  %1003 = vmatprep.subr.mxu0 0.0
  %1004 = vmatpush1.msra.mxu0 %v797
  %1005 = vmatprep.subr.mxu0 0.0
  %1006 = vmatpush1.msra.mxu0 %v798
  %1007 = vmatprep.subr.mxu0 0.0
  %1008 = vmatpush1.msra.mxu0 %v799
  %1009 = vmatprep.subr.mxu0 0.0
  %1010 = vmatpush1.msra.mxu0 %v800
  %1011 = vmatprep.subr.mxu0 0.0
  %1012 = vmatpush1.msra.mxu0 %v801
  %1013 = vmatprep.subr.mxu0 0.0
  %1014 = vmatpush1.msra.mxu0 %v802
  %1015 = vmatprep.subr.mxu0 0.0
  %1016 = vmatpush1.msra.mxu0 %v803
  %1017 = vmatprep.subr.mxu0 0.0
  %1018 = vmatpush1.msra.mxu0 %v804
  %1019 = vmatprep.subr.mxu0 0.0
  %1020 = vmatpush1.msra.mxu0 %v805
  %1021 = vmatprep.subr.mxu0 0.0
  %1022 = vmatpush1.msra.mxu0 %v806
  %1023 = vmatprep.subr.mxu0 0.0
  %1024 = vmatpush1.msra.mxu0 %v807
  %1025 = vmatprep.subr.mxu0 0.0
  %1026 = vmatpush1.msra.mxu0 %v808
  %1027 = vmatprep.subr.mxu0 0.0
  %1028 = vmatpush1.msra.mxu0 %v809
  %1029 = vmatprep.mubr.f32.mxu0 %v767
  %1030 = vmatmul.mubr.f32.gmra.mrb[0].mxu0 %v766
  %v1031 = vpop.f32.mrb[0].mxu0
  %v1032 = vadd.f32 0.0, %v1031
  %v1033 = vpop.f32.mrb[0].mxu0
  %1034 = vdwg.mxu0
  %v1035 = vmul.f32 %v1032, %v810
  %v1036 = vrot.slane %v1035, 4
  %v1037 = vadd.f32 %v1035, %v1036
  %v1038 = vrot.slane %v1037, 2
  %v1039 = vadd.f32 %v1037, %v1038
  %v1040 = vrot.slane %v1039, 1
  %v1041 = vadd.f32 %v1039, %v1040
  %1042 = vmatprep.subr.mxu0 0.0
  %1043 = vmatpush1.msra.mxu0 %v778
  %1044 = vmatprep.subr.mxu0 0.0
  %1045 = vmatpush1.msra.mxu0 %v779
  %1046 = vmatprep.subr.mxu0 0.0
  %1047 = vmatpush1.msra.mxu0 %v780
  %1048 = vmatprep.subr.mxu0 0.0
  %1049 = vmatpush1.msra.mxu0 %v781
  %1050 = vmatprep.subr.mxu0 0.0
  %1051 = vmatpush1.msra.mxu0 %v782
  %1052 = vmatprep.subr.mxu0 0.0
  %1053 = vmatpush1.msra.mxu0 %v783
  %1054 = vmatprep.subr.mxu0 0.0
  %1055 = vmatpush1.msra.mxu0 %v784
  %1056 = vmatprep.subr.mxu0 0.0
  %1057 = vmatpush1.msra.mxu0 %v785
  %1058 = vmatprep.subr.mxu0 0.0
  %1059 = vmatpush1.msra.mxu0 %v786
  %1060 = vmatprep.subr.mxu0 0.0
  %1061 = vmatpush1.msra.mxu0 %v787
  %1062 = vmatprep.subr.mxu0 0.0
  %1063 = vmatpush1.msra.mxu0 %v788
  %1064 = vmatprep.subr.mxu0 0.0
  %1065 = vmatpush1.msra.mxu0 %v789
  %1066 = vmatprep.subr.mxu0 0.0
  %1067 = vmatpush1.msra.mxu0 %v790
  %1068 = vmatprep.subr.mxu0 0.0
  %1069 = vmatpush1.msra.mxu0 %v791
  %1070 = vmatprep.subr.mxu0 0.0
  %1071 = vmatpush1.msra.mxu0 %v792
  %1072 = vmatprep.subr.mxu0 0.0
  %1073 = vmatpush1.msra.mxu0 %v793
  %1074 = vmatprep.subr.mxu0 0.0
  %1075 = vmatpush1.msra.mxu0 %v794
  %1076 = vmatprep.subr.mxu0 0.0
  %1077 = vmatpush1.msra.mxu0 %v795
  %1078 = vmatprep.subr.mxu0 0.0
  %1079 = vmatpush1.msra.mxu0 %v796
  %1080 = vmatprep.subr.mxu0 0.0
  %1081 = vmatpush1.msra.mxu0 %v797
  %1082 = vmatprep.subr.mxu0 0.0
  %1083 = vmatpush1.msra.mxu0 %v798
  %1084 = vmatprep.subr.mxu0 0.0
  %1085 = vmatpush1.msra.mxu0 %v799
  %1086 = vmatprep.subr.mxu0 0.0
  %1087 = vmatpush1.msra.mxu0 %v800
  %1088 = vmatprep.subr.mxu0 0.0
  %1089 = vmatpush1.msra.mxu0 %v801
  %1090 = vmatprep.subr.mxu0 0.0
  %1091 = vmatpush1.msra.mxu0 %v802
  %1092 = vmatprep.subr.mxu0 0.0
  %1093 = vmatpush1.msra.mxu0 %v803
  %1094 = vmatprep.subr.mxu0 0.0
  %1095 = vmatpush1.msra.mxu0 %v804
  %1096 = vmatprep.subr.mxu0 0.0
  %1097 = vmatpush1.msra.mxu0 %v805
  %1098 = vmatprep.subr.mxu0 0.0
  %1099 = vmatpush1.msra.mxu0 %v806
  %1100 = vmatprep.subr.mxu0 0.0
  %1101 = vmatpush1.msra.mxu0 %v807
  %1102 = vmatprep.subr.mxu0 0.0
  %1103 = vmatpush1.msra.mxu0 %v808
  %1104 = vmatprep.subr.mxu0 0.0
  %1105 = vmatpush1.msra.mxu0 %v809
  %1106 = vmatprep.mubr.f32.mxu0 %v769
  %1107 = vmatmul.mubr.f32.gmra.mrb[0].mxu0 %v768
  %v1108 = vpop.f32.mrb[0].mxu0
  %v1109 = vadd.f32 0.0, %v1108
  %v1110 = vpop.f32.mrb[0].mxu0
  %1111 = vdwg.mxu0
  %v1112 = vmul.f32 %v1109, %v810
  %v1113 = vrot.slane %v1112, 4
  %v1114 = vadd.f32 %v1112, %v1113
  %v1115 = vrot.slane %v1114, 2
  %v1116 = vadd.f32 %v1114, %v1115
  %v1117 = vrot.slane %v1116, 1
  %v1118 = vadd.f32 %v1116, %v1117
  %1119 = vmatprep.subr.mxu0 0.0
  %1120 = vmatpush1.msra.mxu0 %v778
  %1121 = vmatprep.subr.mxu0 0.0
  %1122 = vmatpush1.msra.mxu0 %v779
  %1123 = vmatprep.subr.mxu0 0.0
  %1124 = vmatpush1.msra.mxu0 %v780
  %1125 = vmatprep.subr.mxu0 0.0
  %1126 = vmatpush1.msra.mxu0 %v781
  %1127 = vmatprep.subr.mxu0 0.0
  %1128 = vmatpush1.msra.mxu0 %v782
  %1129 = vmatprep.subr.mxu0 0.0
  %1130 = vmatpush1.msra.mxu0 %v783
  %1131 = vmatprep.subr.mxu0 0.0
  %1132 = vmatpush1.msra.mxu0 %v784
  %1133 = vmatprep.subr.mxu0 0.0
  %1134 = vmatpush1.msra.mxu0 %v785
  %1135 = vmatprep.subr.mxu0 0.0
  %1136 = vmatpush1.msra.mxu0 %v786
  %1137 = vmatprep.subr.mxu0 0.0
  %1138 = vmatpush1.msra.mxu0 %v787
  %1139 = vmatprep.subr.mxu0 0.0
  %1140 = vmatpush1.msra.mxu0 %v788
  %1141 = vmatprep.subr.mxu0 0.0
  %1142 = vmatpush1.msra.mxu0 %v789
  %1143 = vmatprep.subr.mxu0 0.0
  %1144 = vmatpush1.msra.mxu0 %v790
  %1145 = vmatprep.subr.mxu0 0.0
  %1146 = vmatpush1.msra.mxu0 %v791
  %1147 = vmatprep.subr.mxu0 0.0
  %1148 = vmatpush1.msra.mxu0 %v792
  %1149 = vmatprep.subr.mxu0 0.0
  %1150 = vmatpush1.msra.mxu0 %v793
  %1151 = vmatprep.subr.mxu0 0.0
  %1152 = vmatpush1.msra.mxu0 %v794
  %1153 = vmatprep.subr.mxu0 0.0
  %1154 = vmatpush1.msra.mxu0 %v795
  %1155 = vmatprep.subr.mxu0 0.0
  %1156 = vmatpush1.msra.mxu0 %v796
  %1157 = vmatprep.subr.mxu0 0.0
  %1158 = vmatpush1.msra.mxu0 %v797
  %1159 = vmatprep.subr.mxu0 0.0
  %1160 = vmatpush1.msra.mxu0 %v798
  %1161 = vmatprep.subr.mxu0 0.0
  %1162 = vmatpush1.msra.mxu0 %v799
  %1163 = vmatprep.subr.mxu0 0.0
  %1164 = vmatpush1.msra.mxu0 %v800
  %1165 = vmatprep.subr.mxu0 0.0
  %1166 = vmatpush1.msra.mxu0 %v801
  %1167 = vmatprep.subr.mxu0 0.0
  %1168 = vmatpush1.msra.mxu0 %v802
  %1169 = vmatprep.subr.mxu0 0.0
  %1170 = vmatpush1.msra.mxu0 %v803
  %1171 = vmatprep.subr.mxu0 0.0
  %1172 = vmatpush1.msra.mxu0 %v804
  %1173 = vmatprep.subr.mxu0 0.0
  %1174 = vmatpush1.msra.mxu0 %v805
  %1175 = vmatprep.subr.mxu0 0.0
  %1176 = vmatpush1.msra.mxu0 %v806
  %1177 = vmatprep.subr.mxu0 0.0
  %1178 = vmatpush1.msra.mxu0 %v807
  %1179 = vmatprep.subr.mxu0 0.0
  %1180 = vmatpush1.msra.mxu0 %v808
  %1181 = vmatprep.subr.mxu0 0.0
  %1182 = vmatpush1.msra.mxu0 %v809
  %1183 = vmatprep.mubr.f32.mxu0 %v771
  %1184 = vmatmul.mubr.f32.gmra.mrb[0].mxu0 %v770
  %v1185 = vpop.f32.mrb[0].mxu0
  %v1186 = vadd.f32 0.0, %v1185
  %v1187 = vpop.f32.mrb[0].mxu0
  %1188 = vdwg.mxu0
  %v1189 = vmul.f32 %v1186, %v810
  %v1190 = vrot.slane %v1189, 4
  %v1191 = vadd.f32 %v1189, %v1190
  %v1192 = vrot.slane %v1191, 2
  %v1193 = vadd.f32 %v1191, %v1192
  %v1194 = vrot.slane %v1193, 1
  %v1195 = vadd.f32 %v1193, %v1194
  %1196 = vmatprep.subr.mxu0 0.0
  %1197 = vmatpush1.msra.mxu0 %v778
  %1198 = vmatprep.subr.mxu0 0.0
  %1199 = vmatpush1.msra.mxu0 %v779
  %1200 = vmatprep.subr.mxu0 0.0
  %1201 = vmatpush1.msra.mxu0 %v780
  %1202 = vmatprep.subr.mxu0 0.0
  %1203 = vmatpush1.msra.mxu0 %v781
  %1204 = vmatprep.subr.mxu0 0.0
  %1205 = vmatpush1.msra.mxu0 %v782
  %1206 = vmatprep.subr.mxu0 0.0
  %1207 = vmatpush1.msra.mxu0 %v783
  %1208 = vmatprep.subr.mxu0 0.0
  %1209 = vmatpush1.msra.mxu0 %v784
  %1210 = vmatprep.subr.mxu0 0.0
  %1211 = vmatpush1.msra.mxu0 %v785
  %1212 = vmatprep.subr.mxu0 0.0
  %1213 = vmatpush1.msra.mxu0 %v786
  %1214 = vmatprep.subr.mxu0 0.0
  %1215 = vmatpush1.msra.mxu0 %v787
  %1216 = vmatprep.subr.mxu0 0.0
  %1217 = vmatpush1.msra.mxu0 %v788
  %1218 = vmatprep.subr.mxu0 0.0
  %1219 = vmatpush1.msra.mxu0 %v789
  %1220 = vmatprep.subr.mxu0 0.0
  %1221 = vmatpush1.msra.mxu0 %v790
  %1222 = vmatprep.subr.mxu0 0.0
  %1223 = vmatpush1.msra.mxu0 %v791
  %1224 = vmatprep.subr.mxu0 0.0
  %1225 = vmatpush1.msra.mxu0 %v792
  %1226 = vmatprep.subr.mxu0 0.0
  %1227 = vmatpush1.msra.mxu0 %v793
  %1228 = vmatprep.subr.mxu0 0.0
  %1229 = vmatpush1.msra.mxu0 %v794
  %1230 = vmatprep.subr.mxu0 0.0
  %1231 = vmatpush1.msra.mxu0 %v795
  %1232 = vmatprep.subr.mxu0 0.0
  %1233 = vmatpush1.msra.mxu0 %v796
  %1234 = vmatprep.subr.mxu0 0.0
  %1235 = vmatpush1.msra.mxu0 %v797
  %1236 = vmatprep.subr.mxu0 0.0
  %1237 = vmatpush1.msra.mxu0 %v798
  %1238 = vmatprep.subr.mxu0 0.0
  %1239 = vmatpush1.msra.mxu0 %v799
  %1240 = vmatprep.subr.mxu0 0.0
  %1241 = vmatpush1.msra.mxu0 %v800
  %1242 = vmatprep.subr.mxu0 0.0
  %1243 = vmatpush1.msra.mxu0 %v801
  %1244 = vmatprep.subr.mxu0 0.0
  %1245 = vmatpush1.msra.mxu0 %v802
  %1246 = vmatprep.subr.mxu0 0.0
  %1247 = vmatpush1.msra.mxu0 %v803
  %1248 = vmatprep.subr.mxu0 0.0
  %1249 = vmatpush1.msra.mxu0 %v804
  %1250 = vmatprep.subr.mxu0 0.0
  %1251 = vmatpush1.msra.mxu0 %v805
  %1252 = vmatprep.subr.mxu0 0.0
  %1253 = vmatpush1.msra.mxu0 %v806
  %1254 = vmatprep.subr.mxu0 0.0
  %1255 = vmatpush1.msra.mxu0 %v807
  %1256 = vmatprep.subr.mxu0 0.0
  %1257 = vmatpush1.msra.mxu0 %v808
  %1258 = vmatprep.subr.mxu0 0.0
  %1259 = vmatpush1.msra.mxu0 %v809
  %1260 = vmatprep.mubr.f32.mxu0 %v773
  %1261 = vmatmul.mubr.f32.gmra.mrb[0].mxu0 %v772
  %v1262 = vpop.f32.mrb[0].mxu0
  %v1263 = vadd.f32 0.0, %v1262
  %v1264 = vpop.f32.mrb[0].mxu0
  %1265 = vdwg.mxu0
  %v1266 = vmul.f32 %v1263, %v810
  %v1267 = vrot.slane %v1266, 4
  %v1268 = vadd.f32 %v1266, %v1267
  %v1269 = vrot.slane %v1268, 2
  %v1270 = vadd.f32 %v1268, %v1269
  %v1271 = vrot.slane %v1270, 1
  %v1272 = vadd.f32 %v1270, %v1271
  %1273 = vmatprep.subr.mxu0 0.0
  %1274 = vmatpush1.msra.mxu0 %v778
  %1275 = vmatprep.subr.mxu0 0.0
  %1276 = vmatpush1.msra.mxu0 %v779
  %1277 = vmatprep.subr.mxu0 0.0
  %1278 = vmatpush1.msra.mxu0 %v780
  %1279 = vmatprep.subr.mxu0 0.0
  %1280 = vmatpush1.msra.mxu0 %v781
  %1281 = vmatprep.subr.mxu0 0.0
  %1282 = vmatpush1.msra.mxu0 %v782
  %1283 = vmatprep.subr.mxu0 0.0
  %1284 = vmatpush1.msra.mxu0 %v783
  %1285 = vmatprep.subr.mxu0 0.0
  %1286 = vmatpush1.msra.mxu0 %v784
  %1287 = vmatprep.subr.mxu0 0.0
  %1288 = vmatpush1.msra.mxu0 %v785
  %1289 = vmatprep.subr.mxu0 0.0
  %1290 = vmatpush1.msra.mxu0 %v786
  %1291 = vmatprep.subr.mxu0 0.0
  %1292 = vmatpush1.msra.mxu0 %v787
  %1293 = vmatprep.subr.mxu0 0.0
  %1294 = vmatpush1.msra.mxu0 %v788
  %1295 = vmatprep.subr.mxu0 0.0
  %1296 = vmatpush1.msra.mxu0 %v789
  %1297 = vmatprep.subr.mxu0 0.0
  %1298 = vmatpush1.msra.mxu0 %v790
  %1299 = vmatprep.subr.mxu0 0.0
  %1300 = vmatpush1.msra.mxu0 %v791
  %1301 = vmatprep.subr.mxu0 0.0
  %1302 = vmatpush1.msra.mxu0 %v792
  %1303 = vmatprep.subr.mxu0 0.0
  %1304 = vmatpush1.msra.mxu0 %v793
  %1305 = vmatprep.subr.mxu0 0.0
  %1306 = vmatpush1.msra.mxu0 %v794
  %1307 = vmatprep.subr.mxu0 0.0
  %1308 = vmatpush1.msra.mxu0 %v795
  %1309 = vmatprep.subr.mxu0 0.0
  %1310 = vmatpush1.msra.mxu0 %v796
  %1311 = vmatprep.subr.mxu0 0.0
  %1312 = vmatpush1.msra.mxu0 %v797
  %1313 = vmatprep.subr.mxu0 0.0
  %1314 = vmatpush1.msra.mxu0 %v798
  %1315 = vmatprep.subr.mxu0 0.0
  %1316 = vmatpush1.msra.mxu0 %v799
  %1317 = vmatprep.subr.mxu0 0.0
  %1318 = vmatpush1.msra.mxu0 %v800
  %1319 = vmatprep.subr.mxu0 0.0
  %1320 = vmatpush1.msra.mxu0 %v801
  %1321 = vmatprep.subr.mxu0 0.0
  %1322 = vmatpush1.msra.mxu0 %v802
  %1323 = vmatprep.subr.mxu0 0.0
  %1324 = vmatpush1.msra.mxu0 %v803
  %1325 = vmatprep.subr.mxu0 0.0
  %1326 = vmatpush1.msra.mxu0 %v804
  %1327 = vmatprep.subr.mxu0 0.0
  %1328 = vmatpush1.msra.mxu0 %v805
  %1329 = vmatprep.subr.mxu0 0.0
  %1330 = vmatpush1.msra.mxu0 %v806
  %1331 = vmatprep.subr.mxu0 0.0
  %1332 = vmatpush1.msra.mxu0 %v807
  %1333 = vmatprep.subr.mxu0 0.0
  %1334 = vmatpush1.msra.mxu0 %v808
  %1335 = vmatprep.subr.mxu0 0.0
  %1336 = vmatpush1.msra.mxu0 %v809
  %1337 = vmatprep.mubr.f32.mxu0 %v775
  %1338 = vmatmul.mubr.f32.gmra.mrb[0].mxu0 %v774
  %v1339 = vpop.f32.mrb[0].mxu0
  %v1340 = vadd.f32 0.0, %v1339
  %v1341 = vpop.f32.mrb[0].mxu0
  %1342 = vdwg.mxu0
  %v1343 = vmul.f32 %v1340, %v810
  %v1344 = vrot.slane %v1343, 4
  %v1345 = vadd.f32 %v1343, %v1344
  %v1346 = vrot.slane %v1345, 2
  %v1347 = vadd.f32 %v1345, %v1346
  %v1348 = vrot.slane %v1347, 1
  %v1349 = vadd.f32 %v1347, %v1348
  %1350 = vmatprep.subr.mxu0 0.0
  %1351 = vmatpush1.msra.mxu0 %v778
  %1352 = vmatprep.subr.mxu0 0.0
  %1353 = vmatpush1.msra.mxu0 %v779
  %1354 = vmatprep.subr.mxu0 0.0
  %1355 = vmatpush1.msra.mxu0 %v780
  %1356 = vmatprep.subr.mxu0 0.0
  %1357 = vmatpush1.msra.mxu0 %v781
  %1358 = vmatprep.subr.mxu0 0.0
  %1359 = vmatpush1.msra.mxu0 %v782
  %1360 = vmatprep.subr.mxu0 0.0
  %1361 = vmatpush1.msra.mxu0 %v783
  %1362 = vmatprep.subr.mxu0 0.0
  %1363 = vmatpush1.msra.mxu0 %v784
  %1364 = vmatprep.subr.mxu0 0.0
  %1365 = vmatpush1.msra.mxu0 %v785
  %1366 = vmatprep.subr.mxu0 0.0
  %1367 = vmatpush1.msra.mxu0 %v786
  %1368 = vmatprep.subr.mxu0 0.0
  %1369 = vmatpush1.msra.mxu0 %v787
  %1370 = vmatprep.subr.mxu0 0.0
  %1371 = vmatpush1.msra.mxu0 %v788
  %1372 = vmatprep.subr.mxu0 0.0
  %1373 = vmatpush1.msra.mxu0 %v789
  %1374 = vmatprep.subr.mxu0 0.0
  %1375 = vmatpush1.msra.mxu0 %v790
  %1376 = vmatprep.subr.mxu0 0.0
  %1377 = vmatpush1.msra.mxu0 %v791
  %1378 = vmatprep.subr.mxu0 0.0
  %1379 = vmatpush1.msra.mxu0 %v792
  %1380 = vmatprep.subr.mxu0 0.0
  %1381 = vmatpush1.msra.mxu0 %v793
  %1382 = vmatprep.subr.mxu0 0.0
  %1383 = vmatpush1.msra.mxu0 %v794
  %1384 = vmatprep.subr.mxu0 0.0
  %1385 = vmatpush1.msra.mxu0 %v795
  %1386 = vmatprep.subr.mxu0 0.0
  %1387 = vmatpush1.msra.mxu0 %v796
  %1388 = vmatprep.subr.mxu0 0.0
  %1389 = vmatpush1.msra.mxu0 %v797
  %1390 = vmatprep.subr.mxu0 0.0
  %1391 = vmatpush1.msra.mxu0 %v798
  %1392 = vmatprep.subr.mxu0 0.0
  %1393 = vmatpush1.msra.mxu0 %v799
  %1394 = vmatprep.subr.mxu0 0.0
  %1395 = vmatpush1.msra.mxu0 %v800
  %1396 = vmatprep.subr.mxu0 0.0
  %1397 = vmatpush1.msra.mxu0 %v801
  %1398 = vmatprep.subr.mxu0 0.0
  %1399 = vmatpush1.msra.mxu0 %v802
  %1400 = vmatprep.subr.mxu0 0.0
  %1401 = vmatpush1.msra.mxu0 %v803
  %1402 = vmatprep.subr.mxu0 0.0
  %1403 = vmatpush1.msra.mxu0 %v804
  %1404 = vmatprep.subr.mxu0 0.0
  %1405 = vmatpush1.msra.mxu0 %v805
  %1406 = vmatprep.subr.mxu0 0.0
  %1407 = vmatpush1.msra.mxu0 %v806
  %1408 = vmatprep.subr.mxu0 0.0
  %1409 = vmatpush1.msra.mxu0 %v807
  %1410 = vmatprep.subr.mxu0 0.0
  %1411 = vmatpush1.msra.mxu0 %v808
  %1412 = vmatprep.subr.mxu0 0.0
  %1413 = vmatpush1.msra.mxu0 %v809
  %1414 = vmatprep.mubr.f32.mxu0 %v777
  %1415 = vmatmul.mubr.f32.gmra.mrb[0].mxu0 %v776
  %v1416 = vpop.f32.mrb[0].mxu0
  %v1417 = vadd.f32 0.0, %v1416
  %v1418 = vpop.f32.mrb[0].mxu0
  %1419 = vdwg.mxu0
  %v1420 = vmul.f32 %v1417, %v810
  %v1421 = vrot.slane %v1420, 4
  %v1422 = vadd.f32 %v1420, %v1421
  %v1423 = vrot.slane %v1422, 2
  %v1424 = vadd.f32 %v1422, %v1423
  %v1425 = vrot.slane %v1424, 1
  %v1426 = vadd.f32 %v1424, %v1425
  %vm1427 = vcmask 1040384
  %v1428 = vsel %vm1427, %v887, %v964
  %vm1429 = vcmask 1041408
  %v1430 = vsel %vm1429, %v1428, %v1041
  %vm1431 = vcmask 1042432
  %v1432 = vsel %vm1431, %v1430, %v1118
  %vm1433 = vcmask 1043456
  %v1434 = vsel %vm1433, %v1432, %v1195
  %vm1435 = vcmask 1044480
  %v1436 = vsel %vm1435, %v1434, %v1272
  %vm1437 = vcmask 1045504
  %v1438 = vsel %vm1437, %v1436, %v1349
  %vm1439 = vcmask 1046528
  %v1440 = vsel %vm1439, %v1438, %v1426
  %1441 = vadd.xlane.f32.xlu0 %v1440
  %v1442 = vpop.xlane.xlu0 %1441
  %v1443 = vrcp.pop 128.0
  %v1444 = vmul.f32 %v1442, %v1443
  %v1445 = vsub.f32 %v1440, %v1444
  %v1446 = vmul.f32 %v1445, %v1445
  %1447 = vadd.xlane.f32.xlu0 %v1446
  %v1448 = vpop.xlane.xlu0 %1447
  %v1449 = vmul.f32 %v1448, %v1443
  %v1450 = vadd.f32 %v1449, 1e-05
  %v1451 = vrsqrt.pop %v1450
  %v1452 = vmul.f32 %v1445, %v1451
  %v1453 = vld [vmem:[%s4] sm:$0x1]
  %v1455 = vlaneseq
  %v1456 = vshrl.u32 %v1455, 7
  %v1457 = vsub.s32 0, %v1456
  %v1458 = vrot.slane %v1453, %v1457
  %v1460 = vmul.f32 %v1452, %v1458
  %v1461 = vld [vmem:[%s5] sm:$0x1]
  %v1463 = vlaneseq
  %v1464 = vshrl.u32 %v1463, 7
  %v1465 = vsub.s32 0, %v1464
  %v1466 = vrot.slane %v1461, %v1465
  %v1468 = vadd.f32 %v1460, %v1466
  %vm1469 = vcmp.ge.f32.partialorder %v1468, 0.0
  %v1470 = vmul.f32 %v1468, 0.01
  %v1471 = vsel %vm1469, %v1468, %v1470
  %v1472 = vld [vmem:[%s6] sm:$0xff]
  %v1473 = vld [vmem:[%s6 + $0x8] sm:$0xff]
  %v1474 = vld [vmem:[%s6 + $0x10] sm:$0xff]
  %v1475 = vld [vmem:[%s6 + $0x18] sm:$0xff]
  %v1476 = vld [vmem:[%s6 + $0x20] sm:$0xff]
  %v1477 = vld [vmem:[%s6 + $0x28] sm:$0xff]
  %v1478 = vld [vmem:[%s6 + $0x30] sm:$0xff]
  %v1479 = vld [vmem:[%s6 + $0x38] sm:$0xff]
  %v1480 = vld [vmem:[%s6 + $0x40] sm:$0xff]
  %v1481 = vld [vmem:[%s6 + $0x48] sm:$0xff]
  %v1482 = vld [vmem:[%s6 + $0x50] sm:$0xff]
  %v1483 = vld [vmem:[%s6 + $0x58] sm:$0xff]
  %v1484 = vld [vmem:[%s6 + $0x60] sm:$0xff]
  %v1485 = vld [vmem:[%s6 + $0x68] sm:$0xff]
  %v1486 = vld [vmem:[%s6 + $0x70] sm:$0xff]
  %v1487 = vld [vmem:[%s6 + $0x78] sm:$0xff]
  %v1488 = vld [vmem:[%s7] sm:$0x1]
  %v1490 = vlaneseq
  %v1491 = vshrl.u32 %v1490, 7
  %v1492 = vsub.s32 0, %v1491
  %v1493 = vrot.slane %v1488, %v1492
  %1495 = vmatprep.subr.mxu0 0.0
  %1496 = vmatpush1.msra.mxu0 %v1472
  %1497 = vmatprep.subr.mxu0 0.0
  %1498 = vmatpush1.msra.mxu0 %v1473
  %1499 = vmatprep.subr.mxu0 0.0
  %1500 = vmatpush1.msra.mxu0 %v1474
  %1501 = vmatprep.subr.mxu0 0.0
  %1502 = vmatpush1.msra.mxu0 %v1475
  %1503 = vmatprep.subr.mxu0 0.0
  %1504 = vmatpush1.msra.mxu0 %v1476
  %1505 = vmatprep.subr.mxu0 0.0
  %1506 = vmatpush1.msra.mxu0 %v1477
  %1507 = vmatprep.subr.mxu0 0.0
  %1508 = vmatpush1.msra.mxu0 %v1478
  %1509 = vmatprep.subr.mxu0 0.0
  %1510 = vmatpush1.msra.mxu0 %v1479
  %1511 = vmatprep.subr.mxu0 0.0
  %1512 = vmatpush1.msra.mxu0 %v1480
  %1513 = vmatprep.subr.mxu0 0.0
  %1514 = vmatpush1.msra.mxu0 %v1481
  %1515 = vmatprep.subr.mxu0 0.0
  %1516 = vmatpush1.msra.mxu0 %v1482
  %1517 = vmatprep.subr.mxu0 0.0
  %1518 = vmatpush1.msra.mxu0 %v1483
  %1519 = vmatprep.subr.mxu0 0.0
  %1520 = vmatpush1.msra.mxu0 %v1484
  %1521 = vmatprep.subr.mxu0 0.0
  %1522 = vmatpush1.msra.mxu0 %v1485
  %1523 = vmatprep.subr.mxu0 0.0
  %1524 = vmatpush1.msra.mxu0 %v1486
  %1525 = vmatprep.subr.mxu0 0.0
  %1526 = vmatpush1.msra.mxu0 %v1487
  %1527 = vmatprep.subr.mxu0 0.0
  %1528 = vmatpush1.msra.mxu0 0.0
  %1529 = vmatprep.subr.mxu0 0.0
  %1530 = vmatpush1.msra.mxu0 0.0
  %1531 = vmatprep.subr.mxu0 0.0
  %1532 = vmatpush1.msra.mxu0 0.0
  %1533 = vmatprep.subr.mxu0 0.0
  %1534 = vmatpush1.msra.mxu0 0.0
  %1535 = vmatprep.subr.mxu0 0.0
  %1536 = vmatpush1.msra.mxu0 0.0
  %1537 = vmatprep.subr.mxu0 0.0
  %1538 = vmatpush1.msra.mxu0 0.0
  %1539 = vmatprep.subr.mxu0 0.0
  %1540 = vmatpush1.msra.mxu0 0.0
  %1541 = vmatprep.subr.mxu0 0.0
  %1542 = vmatpush1.msra.mxu0 0.0
  %1543 = vmatprep.subr.mxu0 0.0
  %1544 = vmatpush1.msra.mxu0 0.0
  %1545 = vmatprep.subr.mxu0 0.0
  %1546 = vmatpush1.msra.mxu0 0.0
  %1547 = vmatprep.subr.mxu0 0.0
  %1548 = vmatpush1.msra.mxu0 0.0
  %1549 = vmatprep.subr.mxu0 0.0
  %1550 = vmatpush1.msra.mxu0 0.0
  %1551 = vmatprep.subr.mxu0 0.0
  %1552 = vmatpush1.msra.mxu0 0.0
  %1553 = vmatprep.subr.mxu0 0.0
  %1554 = vmatpush1.msra.mxu0 0.0
  %1555 = vmatprep.subr.mxu0 0.0
  %1556 = vmatpush1.msra.mxu0 0.0
  %1557 = vmatprep.subr.mxu0 0.0
  %1558 = vmatpush1.msra.mxu0 0.0
  %1559 = vmatprep.mubr.f32.mxu0 0.0
  %1560 = vmatmul.mubr.f32.gmra.mrb[0].mxu0 %v1471
  %v1561 = vpop.f32.mrb[0].mxu0
  %v1562 = vadd.f32 %v1493, %v1561
  %v1563 = vpop.f32.mrb[0].mxu0
  %1564 = vdwg.mxu0
  %1565 = vst [vmem:[%s8] sm:$0xff] %v1562
  // Predicated region
  $region34: #{cnn_lstm_forward.2} parent=0 // pred_check
    _
  $region35: #{cnn_lstm_forward.2} parent=0 // pred_check_branch
    %1567 = sbr.rel (0) target = $region37
  $region36: #{cnn_lstm_forward.2} parent=0 // pred_region
    _
  $region37: #{cnn_lstm_forward.2} parent=0 // pred_fallthru
    _
  // Predicated region
  $region38: #{cnn_lstm_forward.2} parent=0 // pred_check
    _
  $region39: #{cnn_lstm_forward.2} parent=0 // pred_check_branch
    %1569 = sbr.rel (0) target = $region41
  $region40: #{cnn_lstm_forward.2} parent=0 // pred_region
    _
  $region41: #{cnn_lstm_forward.2} parent=0 // pred_fallthru
    _

</llo_original>
